<compile_context>
chip_gen: v7x
topology: tpu7x:2x2x1
jax: 0.10.0
libtpu: 0.0.40
codegen_flags: <defaults>
</compile_context>

<pallas_src>
import math
from functools import partial

import jax
import jax.numpy as jnp
import numpy as np
from jax.experimental import pallas as pl
from jax.experimental.pallas import tpu as pltpu

# ----------------------------- module config --------------------------------
GRID_SIZE = [16, 16, 8]                                  # (rho, phi, z) bins
PC_RANGE = [0.0, -math.pi, -4.0, 50.0, math.pi, 4.0]     # cylindrical range
NUM_INPUT_FEATURES = 5                                   # x,y,z,intensity,time
NUM_OUTPUT_FEATURES = 128
AVERAGE_POINTS = False                                   # -> scatter_max pooling
FEA_COMPRE = None                                        # no compression branch
FEA_DIM = NUM_INPUT_FEATURES + 2 + 8                     # 15
FEA_DIM_PAD = 16                                         # 15 -> 16 (64 B rows)
VOXEL_SIZE = [(PC_RANGE[3] - PC_RANGE[0]) / GRID_SIZE[0],
              (PC_RANGE[4] - PC_RANGE[1]) / GRID_SIZE[1],
              (PC_RANGE[5] - PC_RANGE[2]) / GRID_SIZE[2]]
BN_EPS = 1e-5

# Max point tile (sublane axis) per grid step.
TM_MAX = 8192


def _round_up(x, m):
    return ((x + m - 1) // m) * m


def _choose_tile(n):
    """Point-tile size.

    * big tiles amortize the ~0.35 us per-grid-step overhead,
    * >= 2 grid steps whenever possible so the 'parallel' point axis can be
      sharded across both TensorCores on v7x,
    * multiple of 8 (sublane granule) unless the tile covers the full array.
    """
    if n <= 16:
        return n                      # single full-extent block (always legal)
    return min(TM_MAX, _round_up((n + 1) // 2, 8))


def _vmem_limit_bytes(tm):
    """Scoped-VMEM budget for a given point tile.

    Peak live VMEM ~= double-buffered lane-padded bf16 in/out tiles
    (~0.75 KiB/row) + f32/bf16 hidden intermediates (~3.5 KiB/row worst case)
    + <1 MiB of resident weights.  Capped at 48 MiB so the pipeline always
    fits v7x's 64 MiB/TC with headroom for internal scratch (the cap is not
    binding on v5e/v6e's 128 MiB).
    """
    est = (8 << 20) + tm * 4608
    return int(min(max(est, 16 << 20), 48 << 20))


# ----------------------------- Pallas kernel --------------------------------
def _ppmodel_kernel(x_ref, w1_ref, b1_ref, w2_ref, b2_ref,
                    w3_ref, b3_ref, w4_ref, b4_ref, o_ref):
    """PPmodel MLP: (BN+Linear folded) -> ReLU -> ... -> Linear.

    Dots run with bf16 operands on the MXU and f32 accumulation; the bias-add
    stays f32 and the ReLU + bf16 downcast are fused into one VPU pass.
    """
    x = x_ref[...]                                              # bf16 [tm, 16]
    h = jnp.dot(x, w1_ref[...], preferred_element_type=jnp.float32) + b1_ref[...]
    h = jnp.maximum(h, 0.0).astype(jnp.bfloat16)
    h = jnp.dot(h, w2_ref[...], preferred_element_type=jnp.float32) + b2_ref[...]
    h = jnp.maximum(h, 0.0).astype(jnp.bfloat16)
    h = jnp.dot(h, w3_ref[...], preferred_element_type=jnp.float32) + b3_ref[...]
    h = jnp.maximum(h, 0.0).astype(jnp.bfloat16)
    o_ref[...] = (jnp.dot(h, w4_ref[...], preferred_element_type=jnp.float32)
                  + b4_ref[...]).astype(o_ref.dtype)


def ppmodel_pallas(x, params):
    """x: [N, FEA_DIM_PAD] bf16 -> [N, NUM_OUTPUT_FEATURES] bf16."""
    if x.dtype != jnp.bfloat16:
        x = x.astype(jnp.bfloat16)
    n, fea = x.shape
    out_dim = params[-2].shape[1]
    tm = _choose_tile(n)
    grid = pl.cdiv(n, tm)

    def full_spec(arr):
        # Grid-invariant block (constant index_map): weights/biases stay
        # resident in VMEM across the whole grid.
        return pl.BlockSpec(arr.shape, lambda i: (0,) * arr.ndim)

    return pl.pallas_call(
        _ppmodel_kernel,
        out_shape=jax.ShapeDtypeStruct((n, out_dim), jnp.bfloat16),
        grid=(grid,),
        in_specs=[pl.BlockSpec((tm, fea), lambda i: (i, 0))] +
                 [full_spec(p) for p in params],
        out_specs=pl.BlockSpec((tm, out_dim), lambda i: (i, 0)),
        compiler_params=pltpu.CompilerParams(
            dimension_semantics=("parallel",),
            vmem_limit_bytes=_vmem_limit_bytes(tm)),
    )(x, *params)


# -------------------------- parameter construction --------------------------
def _bn_scale_shift(gamma, beta, mean, var):
    s = gamma / jnp.sqrt(var + BN_EPS)
    return s, beta - mean * s


def init_params(key):
    """Deterministic synthetic params; eval-mode BatchNorm folded into Linears.

    Weights are stored in bf16 (MXU-native on all generations); biases in f32.
    W1 is padded with a zero 16th input row to match the 16-column padded
    point features.
    """
    dims = [FEA_DIM, 64, 128, 256, NUM_OUTPUT_FEATURES]
    keys = iter(jax.random.split(key, 64))

    def lin(din, dout):
        bound = 1.0 / math.sqrt(din)
        w = jax.random.uniform(next(keys), (din, dout), jnp.float32, -bound, bound)
        b = jax.random.uniform(next(keys), (dout,), jnp.float32, -bound, bound)
        return w, b

    def bn(d):
        g = 1.0 + 0.1 * jax.random.normal(next(keys), (d,), jnp.float32)
        b = 0.1 * jax.random.normal(next(keys), (d,), jnp.float32)
        m = 0.1 * jax.random.normal(next(keys), (d,), jnp.float32)
        v = 1.0 + 0.1 * jnp.abs(jax.random.normal(next(keys), (d,), jnp.float32))
        return _bn_scale_shift(g, b, m, v)

    s0, t0 = bn(dims[0])                       # BatchNorm1d(fea_dim) (pre)
    W1, b1 = lin(dims[0], dims[1]); s1, t1 = bn(dims[1])
    W2, b2 = lin(dims[1], dims[2]); s2, t2 = bn(dims[2])
    W3, b3 = lin(dims[2], dims[3]); s3, t3 = bn(dims[3])
    W4, b4 = lin(dims[3], dims[4])             # final Linear, no BN / ReLU

    # fold: BN0 into L1 (pre-scale), BN after each Linear into that Linear.
    W1e = (s0[:, None] * W1) * s1[None, :]
    b1e = (t0 @ W1 + b1) * s1 + t1
    W2e = W2 * s2[None, :];  b2e = b2 * s2 + t2
    W3e = W3 * s3[None, :];  b3e = b3 * s3 + t3
    W4e, b4e = W4, b4

    # pad W1 to 16 input rows (zero row -> identical numerics, aligned K).
    W1e = jnp.concatenate(
        [W1e, jnp.zeros((FEA_DIM_PAD - FEA_DIM, dims[1]), jnp.float32)], axis=0)

    bf = jnp.bfloat16
    return (W1e.astype(bf), b1e.reshape(1, -1),
            W2e.astype(bf), b2e.reshape(1, -1),
            W3e.astype(bf), b3e.reshape(1, -1),
            W4e.astype(bf), b4e.reshape(1, -1))


# ----------------------------- plain-JAX glue --------------------------------
def cart2cylind(xyz):
    rho = jnp.sqrt(xyz[:, 0] ** 2 + xyz[:, 1] ** 2)
    phi = jnp.arctan2(xyz[:, 1], xyz[:, 0])
    return jnp.concatenate([rho[:, None], phi[:, None], xyz[:, 2:]], axis=1)


def voxelize(points_cyl):
    cs = []
    for d in range(3):
        c = jnp.floor((points_cyl[:, d] - PC_RANGE[d]) / VOXEL_SIZE[d]).astype(jnp.int32)
        cs.append(jnp.clip(c, 0, GRID_SIZE[d] - 1))
    # NOTE: matching the torch reference, the validity check runs AFTER the
    # clamp and is therefore always True (out-of-range points are clamped into
    # edge voxels, not dropped).
    valid = jnp.ones(points_cyl.shape[0], dtype=bool)
    for d in range(3):
        valid &= (cs[d] >= 0) & (cs[d] < GRID_SIZE[d])
    vcoors = jnp.stack(cs, axis=-1)[:, [2, 1, 0]]   # reverse -> [vz, vy, vx]
    return vcoors, valid


def get_voxel_centers(vcoors_zyx):
    xyz = vcoors_zyx[:, [2, 1, 0]].astype(jnp.float32)
    vsize = jnp.asarray(VOXEL_SIZE, jnp.float32)
    pcr = jnp.asarray(PC_RANGE[0:3], jnp.float32)
    return (xyz + 0.5) * vsize + pcr


@partial(jax.jit, static_argnames=("batch_size",))
def _forward_core(points, params, *, batch_size):
    """Static-shape (jit-compiled) part of the forward pass."""
    points_xyz = points[:, 1:4]
    points_cyl = cart2cylind(points_xyz)
    vcoors_cyl, _valid = voxelize(points_cyl[:, 0:3])
    # `_valid` is all-True by construction (see voxelize); the torch boolean
    # masking is an identity, so it is skipped to keep shapes static for jit.

    bs_idx = points[:, 0].astype(jnp.int32)
    point_vcoors = jnp.concatenate([bs_idx[:, None], vcoors_cyl], axis=1)  # [b,vz,vy,vx]

    # torch.unique(dim=0) equivalent via encoded keys (lexicographic order
    # preserved), made jit-compatible with a static size= bound.
    Gx, Gy, Gz = GRID_SIZE
    max_vox = batch_size * Gx * Gy * Gz
    key = ((point_vcoors[:, 0] * Gz + point_vcoors[:, 1]) * Gy
           + point_vcoors[:, 2]) * Gx + point_vcoors[:, 3]
    sentinel = jnp.int32(batch_size * Gz * Gy * Gx)      # > any real key
    unq_key, unq_inv, unq_cnt = jnp.unique(
        key, return_inverse=True, return_counts=True,
        size=max_vox, fill_value=sentinel)
    unq_inv = unq_inv.reshape(-1)
    n_vox = jnp.sum(unq_cnt > 0)
    ux = unq_key % Gx; r = unq_key // Gx
    uy = r % Gy; r = r // Gy
    uz = r % Gz; ub = r // Gz
    voxel_coors = jnp.stack([ub, uz, uy, ux], axis=-1)

    points_features = jnp.concatenate(
        [points_cyl, points[:, 1:3], points[:, 4:]], axis=1)

    # prepare_input_feature (torch_scatter.scatter_mean -> segment_sum / count)
    cnt_f = jnp.maximum(unq_cnt.astype(jnp.float32), 1.0)[:, None]
    seg_sum = jax.ops.segment_sum(points_features[:, :5], unq_inv,
                                  num_segments=max_vox)
    pc_mean = (seg_sum / cnt_f)[unq_inv]
    nor_pc = points_features[:, :5] - pc_mean
    centers = get_voxel_centers(point_vcoors[:, 1:])
    center_to_point = points_features[:, :3] - centers

    # [N, 16] bf16: 15 real features + one zero pad column (aligned 64 B rows,
    # W1 has a matching zero row).  bf16 here halves input HBM traffic; the
    # kernel quantized to bf16 anyway, so MXU numerics are unchanged.
    pad_col = jnp.zeros((points.shape[0], FEA_DIM_PAD - FEA_DIM), jnp.float32)
    point_init_features = jnp.concatenate(
        [points_features, nor_pc, center_to_point, pad_col],
        axis=1).astype(jnp.bfloat16)

    # PPmodel MLP — Pallas kernel (hot path), bf16 output.
    pf = ppmodel_pallas(point_init_features, params)

    # voxel pooling (torch_scatter.scatter_max / scatter_mean); runs in bf16
    # (max is order-preserving), upcast to f32 afterwards.
    # TODO(synk): fuse this scatter pooling into the Pallas kernel once a
    # cheaper in-tile segmented-max strategy than log2(TM) roll passes exists.
    if AVERAGE_POINTS:
        features = (jax.ops.segment_sum(pf.astype(jnp.float32), unq_inv,
                                        num_segments=max_vox) / cnt_f)
    else:
        features = jax.ops.segment_max(pf, unq_inv,
                                       num_segments=max_vox).astype(jnp.float32)

    point_vcoors_out = jnp.stack(
        [point_vcoors[:, 0], point_vcoors[:, 3],
         point_vcoors[:, 2], point_vcoors[:, 1]], axis=-1)

    return features, voxel_coors, unq_cnt, n_vox, point_vcoors_out, point_init_features


def forward(points, batch_size, params):
    """points: [N, 1 + NUM_INPUT_FEATURES] = [batch_idx, x, y, z, ...]."""
    (features, voxel_coors, unq_cnt, n_vox,
     point_vcoors_out, point_init_features) = _forward_core(
        points, params, batch_size=batch_size)
    nv = int(n_vox)  # single host sync to recover torch-style compact voxel outputs
    # TODO(synk): voxel_label_enc / fea_compre branches are configured off
    # (None) and not implemented.
    return {
        'voxel_features': features[:nv],
        'point_vcoors': point_vcoors_out,
        'input_shape': GRID_SIZE,
        'voxel_coords': voxel_coors[:nv],
        'num_points_in_voxel': unq_cnt[:nv],
    }, point_init_features


def ppmodel_reference(x, params):
    """Pure-JAX reference with the same numerics (bf16 operands, f32 acc, bf16 out)."""
    W1, b1, W2, b2, W3, b3, W4, b4 = params
    x = x.astype(jnp.bfloat16)

    def dot(a, w):
        return jnp.dot(a, w, preferred_element_type=jnp.float32)

    h = jnp.maximum(dot(x, W1) + b1, 0.0).astype(jnp.bfloat16)
    h = jnp.maximum(dot(h, W2) + b2, 0.0).astype(jnp.bfloat16)
    h = jnp.maximum(dot(h, W3) + b3, 0.0).astype(jnp.bfloat16)
    return (dot(h, W4) + b4).astype(jnp.bfloat16)


# ---------------------------------- main -------------------------------------
if __name__ == "__main__":
    root = jax.random.PRNGKey(0)
    k_pts, k_feat, k_params = jax.random.split(root, 3)

    N, BATCH = 256, 2
    # points: [N, 6] = [batch_idx, x, y, z, intensity, timestamp]
    bidx = jnp.concatenate([jnp.zeros(N // 2), jnp.ones(N - N // 2)]).astype(jnp.float32)
    xy = jax.random.uniform(k_pts, (N, 2), jnp.float32, -30.0, 30.0)
    z = jax.random.uniform(jax.random.fold_in(k_pts, 1), (N, 1), jnp.float32, -3.0, 3.0)
    extra = jax.random.uniform(k_feat, (N, 2), jnp.float32, 0.0, 1.0)
    points = jnp.concatenate([bidx[:, None], xy, z, extra], axis=1)

    params = init_params(k_params)

    batch_dict, point_init_features = forward(points, BATCH, params)
    feats = jax.block_until_ready(batch_dict['voxel_features'])

    # sanity-check the Pallas MLP against a pure-JAX reference (same precision)
    ref = ppmodel_reference(point_init_features, params)
    got = ppmodel_pallas(point_init_features, params)
    np.testing.assert_allclose(np.asarray(got.astype(jnp.float32)),
                               np.asarray(ref.astype(jnp.float32)),
                               rtol=2e-2, atol=2e-2)

    assert feats.shape[1] == NUM_OUTPUT_FEATURES
    assert feats.dtype == jnp.float32
    assert batch_dict['voxel_coords'].shape[0] == feats.shape[0]
    assert batch_dict['num_points_in_voxel'].shape[0] == feats.shape[0]
    print("KERNEL_OK")
</pallas_src>

<mosaic_0001>
module attributes {stable_mosaic.version = 11 : i64} {
  func.func private @main(%arg0: i32) attributes {dimension_semantics = [#tpu.dimension_semantics<core_parallel>], iteration_bounds = array<i64: 2>, tpu.core_type = #tpu.core_type<sc_scalar_subcore>, window_params = []} {
    return
  }
}

module attributes {stable_mosaic.version = 11 : i64} {
  func.func private @main(%arg0: i32) attributes {dimension_semantics = [#tpu.dimension_semantics<core_parallel>], iteration_bounds = array<i64: 2>, tpu.core_type = #tpu.core_type<sc_scalar_subcore>, window_params = []} {
    return
  }
}

module attributes {stable_mosaic.version = 11 : i64} {
  func.func @_ppmodel_kernel(%arg0: i32, %arg1: memref<128x16xbf16, #tpu.memory_space<vmem>>, %arg2: memref<16x64xbf16, #tpu.memory_space<vmem>>, %arg3: memref<1x64xf32, #tpu.memory_space<vmem>>, %arg4: memref<64x128xbf16, #tpu.memory_space<vmem>>, %arg5: memref<1x128xf32, #tpu.memory_space<vmem>>, %arg6: memref<128x256xbf16, #tpu.memory_space<vmem>>, %arg7: memref<1x256xf32, #tpu.memory_space<vmem>>, %arg8: memref<256x128xbf16, #tpu.memory_space<vmem>>, %arg9: memref<1x128xf32, #tpu.memory_space<vmem>>, %arg10: memref<128x128xbf16, #tpu.memory_space<vmem>>) attributes {dimension_semantics = [#tpu.dimension_semantics<parallel>], iteration_bounds = array<i64: 2>, scalar_prefetch = 0 : i64, scratch_operands = 0 : i64, tpu.core_type = #tpu.core_type<tc>, window_params = [{transform_indices = @transform_0, window_bounds = array<i64: 128, 16>}, {pipeline_mode = #tpu.pipeline_mode<synchronous>, transform_indices = @transform_1, window_bounds = array<i64: 16, 64>}, {pipeline_mode = #tpu.pipeline_mode<synchronous>, transform_indices = @transform_2, window_bounds = array<i64: 1, 64>}, {pipeline_mode = #tpu.pipeline_mode<synchronous>, transform_indices = @transform_3, window_bounds = array<i64: 64, 128>}, {pipeline_mode = #tpu.pipeline_mode<synchronous>, transform_indices = @transform_4, window_bounds = array<i64: 1, 128>}, {pipeline_mode = #tpu.pipeline_mode<synchronous>, transform_indices = @transform_5, window_bounds = array<i64: 128, 256>}, {pipeline_mode = #tpu.pipeline_mode<synchronous>, transform_indices = @transform_6, window_bounds = array<i64: 1, 256>}, {pipeline_mode = #tpu.pipeline_mode<synchronous>, transform_indices = @transform_7, window_bounds = array<i64: 256, 128>}, {pipeline_mode = #tpu.pipeline_mode<synchronous>, transform_indices = @transform_8, window_bounds = array<i64: 1, 128>}, {transform_indices = @transform_9, window_bounds = array<i64: 128, 128>}]} {
    %c0 = arith.constant 0 : index
    %c0_0 = arith.constant 0 : index
    %0 = vector.load %arg1[%c0, %c0_0] : memref<128x16xbf16, #tpu.memory_space<vmem>>, vector<128x16xbf16>
    %c0_1 = arith.constant 0 : index
    %c0_2 = arith.constant 0 : index
    %1 = vector.load %arg2[%c0_1, %c0_2] : memref<16x64xbf16, #tpu.memory_space<vmem>>, vector<16x64xbf16>
    %cst = arith.constant dense<0.000000e+00> : vector<128x64xf32>
    %2 = tpu.matmul %0, %1, %cst {dimension_numbers = #tpu.dot_dimension_numbers<[1], [0], [0], [1], [0, 0, 1, 1], [], []>} : vector<128x16xbf16>, vector<16x64xbf16>, vector<128x64xf32> -> vector<128x64xf32>
    %c0_3 = arith.constant 0 : index
    %c0_4 = arith.constant 0 : index
    %3 = vector.load %arg3[%c0_3, %c0_4] : memref<1x64xf32, #tpu.memory_space<vmem>>, vector<1x64xf32>
    %4 = vector.broadcast %3 : vector<1x64xf32> to vector<128x64xf32>
    %5 = arith.addf %2, %4 : vector<128x64xf32>
    %cst_5 = arith.constant 0.000000e+00 : f32
    %6 = vector.broadcast %cst_5 : f32 to vector<128x64xf32>
    %7 = arith.maximumf %5, %6 : vector<128x64xf32>
    %8 = arith.truncf %7 : vector<128x64xf32> to vector<128x64xbf16>
    %c0_6 = arith.constant 0 : index
    %c0_7 = arith.constant 0 : index
    %9 = vector.load %arg4[%c0_6, %c0_7] : memref<64x128xbf16, #tpu.memory_space<vmem>>, vector<64x128xbf16>
    %cst_8 = arith.constant dense<0.000000e+00> : vector<128x128xf32>
    %10 = tpu.matmul %8, %9, %cst_8 {dimension_numbers = #tpu.dot_dimension_numbers<[1], [0], [0], [1], [0, 0, 1, 1], [], []>} : vector<128x64xbf16>, vector<64x128xbf16>, vector<128x128xf32> -> vector<128x128xf32>
    %c0_9 = arith.constant 0 : index
    %c0_10 = arith.constant 0 : index
    %11 = vector.load %arg5[%c0_9, %c0_10] : memref<1x128xf32, #tpu.memory_space<vmem>>, vector<1x128xf32>
    %12 = vector.broadcast %11 : vector<1x128xf32> to vector<128x128xf32>
    %13 = arith.addf %10, %12 : vector<128x128xf32>
    %cst_11 = arith.constant 0.000000e+00 : f32
    %14 = vector.broadcast %cst_11 : f32 to vector<128x128xf32>
    %15 = arith.maximumf %13, %14 : vector<128x128xf32>
    %16 = arith.truncf %15 : vector<128x128xf32> to vector<128x128xbf16>
    %c0_12 = arith.constant 0 : index
    %c0_13 = arith.constant 0 : index
    %17 = vector.load %arg6[%c0_12, %c0_13] : memref<128x256xbf16, #tpu.memory_space<vmem>>, vector<128x256xbf16>
    %cst_14 = arith.constant dense<0.000000e+00> : vector<128x256xf32>
    %18 = tpu.matmul %16, %17, %cst_14 {dimension_numbers = #tpu.dot_dimension_numbers<[1], [0], [0], [1], [0, 0, 1, 1], [], []>} : vector<128x128xbf16>, vector<128x256xbf16>, vector<128x256xf32> -> vector<128x256xf32>
    %c0_15 = arith.constant 0 : index
    %c0_16 = arith.constant 0 : index
    %19 = vector.load %arg7[%c0_15, %c0_16] : memref<1x256xf32, #tpu.memory_space<vmem>>, vector<1x256xf32>
    %20 = vector.broadcast %19 : vector<1x256xf32> to vector<128x256xf32>
    %21 = arith.addf %18, %20 : vector<128x256xf32>
    %cst_17 = arith.constant 0.000000e+00 : f32
    %22 = vector.broadcast %cst_17 : f32 to vector<128x256xf32>
    %23 = arith.maximumf %21, %22 : vector<128x256xf32>
    %24 = arith.truncf %23 : vector<128x256xf32> to vector<128x256xbf16>
    %c0_18 = arith.constant 0 : index
    %c0_19 = arith.constant 0 : index
    %25 = vector.load %arg8[%c0_18, %c0_19] : memref<256x128xbf16, #tpu.memory_space<vmem>>, vector<256x128xbf16>
    %cst_20 = arith.constant dense<0.000000e+00> : vector<128x128xf32>
    %26 = tpu.matmul %24, %25, %cst_20 {dimension_numbers = #tpu.dot_dimension_numbers<[1], [0], [0], [1], [0, 0, 1, 1], [], []>} : vector<128x256xbf16>, vector<256x128xbf16>, vector<128x128xf32> -> vector<128x128xf32>
    %c0_21 = arith.constant 0 : index
    %c0_22 = arith.constant 0 : index
    %27 = vector.load %arg9[%c0_21, %c0_22] : memref<1x128xf32, #tpu.memory_space<vmem>>, vector<1x128xf32>
    %28 = vector.broadcast %27 : vector<1x128xf32> to vector<128x128xf32>
    %29 = arith.addf %26, %28 : vector<128x128xf32>
    %30 = arith.truncf %29 : vector<128x128xf32> to vector<128x128xbf16>
    %c0_23 = arith.constant 0 : index
    %c0_24 = arith.constant 0 : index
    %31 = vector.load %arg10[%c0_23, %c0_24] : memref<128x128xbf16, #tpu.memory_space<vmem>>, vector<128x128xbf16>
    tpu.vector_store %arg10[%c0_23, %c0_24], %30 {strides = array<i32>} : memref<128x128xbf16, #tpu.memory_space<vmem>>, vector<128x128xbf16>,
    return
  }
  func.func @transform_0(%arg0: i32) -> (i32, i32) {
    %c0_i32 = arith.constant 0 : i32
    %c0_i32_0 = arith.constant 0 : i32
    return %arg0, %c0_i32 : i32, i32
  }
  func.func @transform_1(%arg0: i32) -> (i32, i32) {
    %c0_i32 = arith.constant 0 : i32
    %c0_i32_0 = arith.constant 0 : i32
    %c0_i32_1 = arith.constant 0 : i32
    return %c0_i32, %c0_i32_0 : i32, i32
  }
  func.func @transform_2(%arg0: i32) -> (i32, i32) {
    %c0_i32 = arith.constant 0 : i32
    %c0_i32_0 = arith.constant 0 : i32
    %c0_i32_1 = arith.constant 0 : i32
    return %c0_i32, %c0_i32_0 : i32, i32
  }
  func.func @transform_3(%arg0: i32) -> (i32, i32) {
    %c0_i32 = arith.constant 0 : i32
    %c0_i32_0 = arith.constant 0 : i32
    %c0_i32_1 = arith.constant 0 : i32
    return %c0_i32, %c0_i32_0 : i32, i32
  }
  func.func @transform_4(%arg0: i32) -> (i32, i32) {
    %c0_i32 = arith.constant 0 : i32
    %c0_i32_0 = arith.constant 0 : i32
    %c0_i32_1 = arith.constant 0 : i32
    return %c0_i32, %c0_i32_0 : i32, i32
  }
  func.func @transform_5(%arg0: i32) -> (i32, i32) {
    %c0_i32 = arith.constant 0 : i32
    %c0_i32_0 = arith.constant 0 : i32
    %c0_i32_1 = arith.constant 0 : i32
    return %c0_i32, %c0_i32_0 : i32, i32
  }
  func.func @transform_6(%arg0: i32) -> (i32, i32) {
    %c0_i32 = arith.constant 0 : i32
    %c0_i32_0 = arith.constant 0 : i32
    %c0_i32_1 = arith.constant 0 : i32
    return %c0_i32, %c0_i32_0 : i32, i32
  }
  func.func @transform_7(%arg0: i32) -> (i32, i32) {
    %c0_i32 = arith.constant 0 : i32
    %c0_i32_0 = arith.constant 0 : i32
    %c0_i32_1 = arith.constant 0 : i32
    return %c0_i32, %c0_i32_0 : i32, i32
  }
  func.func @transform_8(%arg0: i32) -> (i32, i32) {
    %c0_i32 = arith.constant 0 : i32
    %c0_i32_0 = arith.constant 0 : i32
    %c0_i32_1 = arith.constant 0 : i32
    return %c0_i32, %c0_i32_0 : i32, i32
  }
  func.func @transform_9(%arg0: i32) -> (i32, i32) {
    %c0_i32 = arith.constant 0 : i32
    %c0_i32_0 = arith.constant 0 : i32
    return %arg0, %c0_i32 : i32, i32
  }
}

</mosaic_0001>

<llo_original>
// kernel: _forward_core.1
$region0: #{_forward_core.1}
  #allocation0 [shape = 'u32[]', space=smem, size = 0x4, offset = 0x4, fixed_abs, tag = 'smem constant byte address 0x4 - core index']
  #allocation1 [shape = 'u32[144,128]{1,0:T(1,128)}', space=vmem, size = 0x12000, scoped, tag = 'internal scratch']
  %s0 = inlined_call_operand.vmem [shape: bf16[256,16], index: 0, kind: input, shape index: {}]
  %s1 = inlined_call_operand.vmem [shape: bf16[16,64], index: 1, kind: input, shape index: {}]
  %s2 = inlined_call_operand.vmem [shape: f32[1,64], index: 2, kind: input, shape index: {}]
  %s3 = inlined_call_operand.vmem [shape: bf16[64,128], index: 3, kind: input, shape index: {}]
  %s4 = inlined_call_operand.vmem [shape: f32[1,128], index: 4, kind: input, shape index: {}]
  %s5 = inlined_call_operand.vmem [shape: bf16[128,256], index: 5, kind: input, shape index: {}]
  %s6 = inlined_call_operand.vmem [shape: f32[1,256], index: 6, kind: input, shape index: {}]
  %s7 = inlined_call_operand.vmem [shape: bf16[256,128], index: 7, kind: input, shape index: {}]
  %s8 = inlined_call_operand.vmem [shape: f32[1,128], index: 8, kind: input, shape index: {}]
  %s9 = inlined_call_operand.vmem [shape: bf16[256,128], index: 9, kind: output, shape index: {}]
  %s10 = sld [smem:[#allocation0]]
  $region69: #{_forward_core.1} parent=0
    _
  %s12 = ssub.s32 1, %s10
  %s13 = scalar_select 0, %s12, %s10
  loop: start=0, step=1, limit=4
  $region2: #{_forward_core.1} parent=0 // loop_pre_header
    _
  $region3: #{_forward_core.1} parent=0 // loop_header
    %s15 = sphi 0, %s19
    %p16 = scmp.ge.s32.totalorder %s15, 4
    %s25 = sphi 0, %s27
    %s28 = sphi 0, %s25
    %s29 = sphi 0, %s28
    %s45 = sphi 0, %s29
    %s49 = sphi 0, %s49
    %s51 = sphi 0, %s49
    %s52 = sphi 0, %s51
    %s66 = sphi 0, %s52
    %s70 = sphi 0, %s70
    %s72 = sphi 0, %s70
    %s73 = sphi 0, %s72
    %s87 = sphi 0, %s73
    %s91 = sphi 0, %s91
    %s93 = sphi 0, %s91
    %s94 = sphi 0, %s93
    %s108 = sphi 0, %s94
    %s112 = sphi 0, %s112
    %s114 = sphi 0, %s112
    %s115 = sphi 0, %s114
    %s129 = sphi 0, %s115
    %s133 = sphi 0, %s133
    %s135 = sphi 0, %s133
    %s136 = sphi 0, %s135
    %s150 = sphi 0, %s136
    %s154 = sphi 0, %s154
    %s156 = sphi 0, %s154
    %s157 = sphi 0, %s156
    %s171 = sphi 0, %s157
    %s175 = sphi 0, %s175
    %s177 = sphi 0, %s175
    %s178 = sphi 0, %s177
    %s192 = sphi 0, %s178
    %s196 = sphi 0, %s196
    %s198 = sphi 0, %s196
    %s199 = sphi 0, %s198
    %s213 = sphi 0, %s199
    %s219 = sphi 0, %s221
    %s222 = sphi 0, %s219
    %s223 = sphi 0, %s222
    %s239 = sphi 0, %s223
  $region4: #{_forward_core.1} parent=0 // loop_header_branch
    %18 = sbr.rel (%p16) target = $region8
  $region5: #{_forward_core.1} parent=0 // loop_body
    %s20 = ssub.s32 %s15, 1
    %s21 = ssub.s32 %s15, 2
    %s22 = sadd.s32 %s15, 1
    %s23 = ssub.s32 %s15, %s22
    %p24 = scmp.eq.s32.totalorder %s23, 0
    %s26 = sadd.s32 %s25, 1
    %s27 = scalar_select %p24, %s25, %s26
    %p30 = pneg %p24
    %p31 = scmp.eq.s32.totalorder %s15, 1
    %p32 = por %p30, %p31
    %p33 = scmp.ne.s32.totalorder %s25, %s28
    %p34 = scmp.eq.s32.totalorder %s15, 0
    %p35 = por %p33, %p34
    %p36 = scmp.ne.s32.totalorder %s25, %s28
    %p37 = scmp.eq.s32.totalorder %s20, 1
    %p38 = por %p36, %p37
    %p39 = scmp.ne.s32.totalorder %s28, %s29
    %p40 = scmp.eq.s32.totalorder %s20, 0
    %p41 = por %p39, %p40
    %p42 = scmp.ne.s32.totalorder %s28, %s29
    %p43 = scmp.eq.s32.totalorder %s21, 1
    %p44 = por %p42, %p43
    %p46 = scmp.ne.s32.totalorder %s29, %s45
    %p47 = scmp.eq.s32.totalorder %s21, 0
    %p48 = por %p46, %p47
    %s50 = sadd.s32 %s49, 1
    %p53 = scmp.eq.s32.totalorder %s15, 1
    %p54 = scmp.ne.s32.totalorder %s49, %s51
    %p55 = scmp.eq.s32.totalorder %s15, 0
    %p56 = por %p54, %p55
    %p57 = scmp.ne.s32.totalorder %s49, %s51
    %p58 = scmp.eq.s32.totalorder %s20, 1
    %p59 = por %p57, %p58
    %p60 = scmp.ne.s32.totalorder %s51, %s52
    %p61 = scmp.eq.s32.totalorder %s20, 0
    %p62 = por %p60, %p61
    %p63 = scmp.ne.s32.totalorder %s51, %s52
    %p64 = scmp.eq.s32.totalorder %s21, 1
    %p65 = por %p63, %p64
    %p67 = scmp.ne.s32.totalorder %s52, %s66
    %p68 = scmp.eq.s32.totalorder %s21, 0
    %p69 = por %p67, %p68
    %s71 = sadd.s32 %s70, 1
    %p74 = scmp.eq.s32.totalorder %s15, 1
    %p75 = scmp.ne.s32.totalorder %s70, %s72
    %p76 = scmp.eq.s32.totalorder %s15, 0
    %p77 = por %p75, %p76
    %p78 = scmp.ne.s32.totalorder %s70, %s72
    %p79 = scmp.eq.s32.totalorder %s20, 1
    %p80 = por %p78, %p79
    %p81 = scmp.ne.s32.totalorder %s72, %s73
    %p82 = scmp.eq.s32.totalorder %s20, 0
    %p83 = por %p81, %p82
    %p84 = scmp.ne.s32.totalorder %s72, %s73
    %p85 = scmp.eq.s32.totalorder %s21, 1
    %p86 = por %p84, %p85
    %p88 = scmp.ne.s32.totalorder %s73, %s87
    %p89 = scmp.eq.s32.totalorder %s21, 0
    %p90 = por %p88, %p89
    %s92 = sadd.s32 %s91, 1
    %p95 = scmp.eq.s32.totalorder %s15, 1
    %p96 = scmp.ne.s32.totalorder %s91, %s93
    %p97 = scmp.eq.s32.totalorder %s15, 0
    %p98 = por %p96, %p97
    %p99 = scmp.ne.s32.totalorder %s91, %s93
    %p100 = scmp.eq.s32.totalorder %s20, 1
    %p101 = por %p99, %p100
    %p102 = scmp.ne.s32.totalorder %s93, %s94
    %p103 = scmp.eq.s32.totalorder %s20, 0
    %p104 = por %p102, %p103
    %p105 = scmp.ne.s32.totalorder %s93, %s94
    %p106 = scmp.eq.s32.totalorder %s21, 1
    %p107 = por %p105, %p106
    %p109 = scmp.ne.s32.totalorder %s94, %s108
    %p110 = scmp.eq.s32.totalorder %s21, 0
    %p111 = por %p109, %p110
    %s113 = sadd.s32 %s112, 1
    %p116 = scmp.eq.s32.totalorder %s15, 1
    %p117 = scmp.ne.s32.totalorder %s112, %s114
    %p118 = scmp.eq.s32.totalorder %s15, 0
    %p119 = por %p117, %p118
    %p120 = scmp.ne.s32.totalorder %s112, %s114
    %p121 = scmp.eq.s32.totalorder %s20, 1
    %p122 = por %p120, %p121
    %p123 = scmp.ne.s32.totalorder %s114, %s115
    %p124 = scmp.eq.s32.totalorder %s20, 0
    %p125 = por %p123, %p124
    %p126 = scmp.ne.s32.totalorder %s114, %s115
    %p127 = scmp.eq.s32.totalorder %s21, 1
    %p128 = por %p126, %p127
    %p130 = scmp.ne.s32.totalorder %s115, %s129
    %p131 = scmp.eq.s32.totalorder %s21, 0
    %p132 = por %p130, %p131
    %s134 = sadd.s32 %s133, 1
    %p137 = scmp.eq.s32.totalorder %s15, 1
    %p138 = scmp.ne.s32.totalorder %s133, %s135
    %p139 = scmp.eq.s32.totalorder %s15, 0
    %p140 = por %p138, %p139
    %p141 = scmp.ne.s32.totalorder %s133, %s135
    %p142 = scmp.eq.s32.totalorder %s20, 1
    %p143 = por %p141, %p142
    %p144 = scmp.ne.s32.totalorder %s135, %s136
    %p145 = scmp.eq.s32.totalorder %s20, 0
    %p146 = por %p144, %p145
    %p147 = scmp.ne.s32.totalorder %s135, %s136
    %p148 = scmp.eq.s32.totalorder %s21, 1
    %p149 = por %p147, %p148
    %p151 = scmp.ne.s32.totalorder %s136, %s150
    %p152 = scmp.eq.s32.totalorder %s21, 0
    %p153 = por %p151, %p152
    %s155 = sadd.s32 %s154, 1
    %p158 = scmp.eq.s32.totalorder %s15, 1
    %p159 = scmp.ne.s32.totalorder %s154, %s156
    %p160 = scmp.eq.s32.totalorder %s15, 0
    %p161 = por %p159, %p160
    %p162 = scmp.ne.s32.totalorder %s154, %s156
    %p163 = scmp.eq.s32.totalorder %s20, 1
    %p164 = por %p162, %p163
    %p165 = scmp.ne.s32.totalorder %s156, %s157
    %p166 = scmp.eq.s32.totalorder %s20, 0
    %p167 = por %p165, %p166
    %p168 = scmp.ne.s32.totalorder %s156, %s157
    %p169 = scmp.eq.s32.totalorder %s21, 1
    %p170 = por %p168, %p169
    %p172 = scmp.ne.s32.totalorder %s157, %s171
    %p173 = scmp.eq.s32.totalorder %s21, 0
    %p174 = por %p172, %p173
    %s176 = sadd.s32 %s175, 1
    %p179 = scmp.eq.s32.totalorder %s15, 1
    %p180 = scmp.ne.s32.totalorder %s175, %s177
    %p181 = scmp.eq.s32.totalorder %s15, 0
    %p182 = por %p180, %p181
    %p183 = scmp.ne.s32.totalorder %s175, %s177
    %p184 = scmp.eq.s32.totalorder %s20, 1
    %p185 = por %p183, %p184
    %p186 = scmp.ne.s32.totalorder %s177, %s178
    %p187 = scmp.eq.s32.totalorder %s20, 0
    %p188 = por %p186, %p187
    %p189 = scmp.ne.s32.totalorder %s177, %s178
    %p190 = scmp.eq.s32.totalorder %s21, 1
    %p191 = por %p189, %p190
    %p193 = scmp.ne.s32.totalorder %s178, %s192
    %p194 = scmp.eq.s32.totalorder %s21, 0
    %p195 = por %p193, %p194
    %s197 = sadd.s32 %s196, 1
    %p200 = scmp.eq.s32.totalorder %s15, 1
    %p201 = scmp.ne.s32.totalorder %s196, %s198
    %p202 = scmp.eq.s32.totalorder %s15, 0
    %p203 = por %p201, %p202
    %p204 = scmp.ne.s32.totalorder %s196, %s198
    %p205 = scmp.eq.s32.totalorder %s20, 1
    %p206 = por %p204, %p205
    %p207 = scmp.ne.s32.totalorder %s198, %s199
    %p208 = scmp.eq.s32.totalorder %s20, 0
    %p209 = por %p207, %p208
    %p210 = scmp.ne.s32.totalorder %s198, %s199
    %p211 = scmp.eq.s32.totalorder %s21, 1
    %p212 = por %p210, %p211
    %p214 = scmp.ne.s32.totalorder %s199, %s213
    %p215 = scmp.eq.s32.totalorder %s21, 0
    %p216 = por %p214, %p215
    %s217 = ssub.s32 %s15, %s22
    %p218 = scmp.eq.s32.totalorder %s217, 0
    %s220 = sadd.s32 %s219, 1
    %s221 = scalar_select %p218, %s219, %s220
    %p224 = pneg %p218
    %p225 = scmp.eq.s32.totalorder %s15, 1
    %p226 = por %p224, %p225
    %p227 = scmp.ne.s32.totalorder %s219, %s222
    %p228 = scmp.eq.s32.totalorder %s15, 0
    %p229 = por %p227, %p228
    %p230 = scmp.ne.s32.totalorder %s219, %s222
    %p231 = scmp.eq.s32.totalorder %s20, 1
    %p232 = por %p230, %p231
    %p233 = scmp.ne.s32.totalorder %s222, %s223
    %p234 = scmp.eq.s32.totalorder %s20, 0
    %p235 = por %p233, %p234
    %p236 = scmp.ne.s32.totalorder %s222, %s223
    %p237 = scmp.eq.s32.totalorder %s21, 1
    %p238 = por %p236, %p237
    %p240 = scmp.ne.s32.totalorder %s223, %s239
    %p241 = scmp.eq.s32.totalorder %s21, 0
    %p242 = por %p240, %p241
    %p243 = scmp.le.s32.totalorder 1, %s15
    %p244 = scmp.lt.s32.totalorder %s15, 3
    %p245 = pnand %p243, %p244
    %p246 = pneg %p245
    // Predicated region
    $region9: #{_forward_core.1} parent=5 // pred_check
      _
    $region10: #{_forward_core.1} parent=5 // pred_check_branch
      %248 = sbr.rel (%p245) target = $region12
    $region11: #{_forward_core.1} parent=5 // pred_region
      %s249 = ssub.s32 %s15, 1
      // Predicated region
      $region13: #{_forward_core.1} parent=11 // pred_check
        %p250 = pneg %p62
      $region14: #{_forward_core.1} parent=11 // pred_check_branch
        %252 = sbr.rel (%p250) target = $region16
      $region15: #{_forward_core.1} parent=11 // pred_region
        _
      $region16: #{_forward_core.1} parent=11 // pred_fallthru
        _
      // Predicated region
      $region17: #{_forward_core.1} parent=11 // pred_check
        %p253 = pneg %p83
      $region18: #{_forward_core.1} parent=11 // pred_check_branch
        %255 = sbr.rel (%p253) target = $region20
      $region19: #{_forward_core.1} parent=11 // pred_region
        _
      $region20: #{_forward_core.1} parent=11 // pred_fallthru
        _
      // Predicated region
      $region21: #{_forward_core.1} parent=11 // pred_check
        %p256 = pneg %p104
      $region22: #{_forward_core.1} parent=11 // pred_check_branch
        %258 = sbr.rel (%p256) target = $region24
      $region23: #{_forward_core.1} parent=11 // pred_region
        _
      $region24: #{_forward_core.1} parent=11 // pred_fallthru
        _
      // Predicated region
      $region25: #{_forward_core.1} parent=11 // pred_check
        %p259 = pneg %p125
      $region26: #{_forward_core.1} parent=11 // pred_check_branch
        %261 = sbr.rel (%p259) target = $region28
      $region27: #{_forward_core.1} parent=11 // pred_region
        _
      $region28: #{_forward_core.1} parent=11 // pred_fallthru
        _
      // Predicated region
      $region29: #{_forward_core.1} parent=11 // pred_check
        %p262 = pneg %p146
      $region30: #{_forward_core.1} parent=11 // pred_check_branch
        %264 = sbr.rel (%p262) target = $region32
      $region31: #{_forward_core.1} parent=11 // pred_region
        _
      $region32: #{_forward_core.1} parent=11 // pred_fallthru
        _
      // Predicated region
      $region33: #{_forward_core.1} parent=11 // pred_check
        %p265 = pneg %p167
      $region34: #{_forward_core.1} parent=11 // pred_check_branch
        %267 = sbr.rel (%p265) target = $region36
      $region35: #{_forward_core.1} parent=11 // pred_region
        _
      $region36: #{_forward_core.1} parent=11 // pred_fallthru
        _
      // Predicated region
      $region37: #{_forward_core.1} parent=11 // pred_check
        %p268 = pneg %p188
      $region38: #{_forward_core.1} parent=11 // pred_check_branch
        %270 = sbr.rel (%p268) target = $region40
      $region39: #{_forward_core.1} parent=11 // pred_region
        _
      $region40: #{_forward_core.1} parent=11 // pred_fallthru
        _
      // Predicated region
      $region41: #{_forward_core.1} parent=11 // pred_check
        %p271 = pneg %p209
      $region42: #{_forward_core.1} parent=11 // pred_check_branch
        %273 = sbr.rel (%p271) target = $region44
      $region43: #{_forward_core.1} parent=11 // pred_region
        _
      $region44: #{_forward_core.1} parent=11 // pred_fallthru
        _
    $region12: #{_forward_core.1} parent=5 // pred_fallthru
      _
    %p274 = scmp.lt.s32.totalorder %s15, 2
    // Predicated region
    $region45: #{_forward_core.1} parent=5 // pred_check
      %p275 = pneg %p274
    $region46: #{_forward_core.1} parent=5 // pred_check_branch
      %277 = sbr.rel (%p275) target = $region48
    $region47: #{_forward_core.1} parent=5 // pred_region
      // Predicated region
      $region49: #{_forward_core.1} parent=47 // pred_check
        %p278 = pneg %p35
      $region50: #{_forward_core.1} parent=47 // pred_check_branch
        %280 = sbr.rel (%p278) target = $region52
      $region51: #{_forward_core.1} parent=47 // pred_region
        %s281 = smul.u32 16, %s15
        %p282 = scmp.lt.s32.totalorder %s281, 31
        %s283 = scalar_select %p282, %s281, 31
        %s284 = smul.addr %s283, 4
        %s285 = scalar_lea.vmem %s0, %s284
        %s286 = smul.u32 16, %s15
      $region52: #{_forward_core.1} parent=47 // pred_fallthru
        _
    $region48: #{_forward_core.1} parent=5 // pred_fallthru
      _
    %p287 = scmp.le.s32.totalorder 1, %s15
    %p288 = scmp.lt.s32.totalorder %s15, 3
    %p289 = pnand %p287, %p288
    %p290 = pneg %p289
    // Predicated region
    $region53: #{_forward_core.1} parent=5 // pred_check
      _
    $region54: #{_forward_core.1} parent=5 // pred_check_branch
      %292 = sbr.rel (%p289) target = $region56
    $region55: #{_forward_core.1} parent=5 // pred_region
      %s293 = ssub.s32 %s15, 1
      %s294 = smul.u32 16, %s20
      %p295 = scmp.lt.s32.totalorder %s294, 31
      %s296 = scalar_select %p295, %s294, 31
      %s297 = smul.addr %s296, 4
      %s298 = scalar_lea.vmem %s0, %s297
      %p299 = pneg %p41
      %p300 = pneg %p38
      %p301 = pneg %p62
      %p302 = pneg %p59
      %p303 = pneg %p83
      %p304 = pneg %p80
      %p305 = pneg %p104
      %p306 = pneg %p101
      %p307 = pneg %p125
      %p308 = pneg %p122
      %p309 = pneg %p146
      %p310 = pneg %p143
      %p311 = pneg %p167
      %p312 = pneg %p164
      %p313 = pneg %p188
      %p314 = pneg %p185
      %p315 = pneg %p209
      %p316 = pneg %p206
      %p317 = pneg %p235
      %p318 = pneg %p232
      %s319 = smul.u32 16, %s20
      %p320 = scmp.lt.s32.totalorder %s319, 31
      %s321 = scalar_select %p320, %s319, 31
      %s322 = smul.addr %s321, 4
      %s323 = scalar_lea.vmem %s9, %s322
      %s324 = smul.u32 16, %s20
      %p325 = scmp.lt.s32.totalorder %s324, 31
      %s326 = scalar_select %p325, %s324, 31
      %s327 = smul.addr %s326, 4
      %s328 = scalar_lea.vmem %s0, %s327
      %s329 = smul.u32 16, %s20
      %s330 = smul.u32 16, %s20
      %p331 = scmp.lt.s32.totalorder %s330, 31
      %s332 = scalar_select %p331, %s330, 31
      %s333 = smul.addr %s332, 4
      %s334 = scalar_lea.vmem %s9, %s333
      %s335 = smul.u32 16, %s20
      %v337 = vld [vmem:[%s328] sm:$0xf]
      %v338 = vld [vmem:[%s328 + $0x4] sm:$0xf]
      %v339 = vld [vmem:[%s328 + $0x8] sm:$0xf]
      %v340 = vld [vmem:[%s328 + $0xc] sm:$0xf]
      %v341 = vld [vmem:[%s328 + $0x10] sm:$0xf]
      %v342 = vld [vmem:[%s328 + $0x14] sm:$0xf]
      %v343 = vld [vmem:[%s328 + $0x18] sm:$0xf]
      %v344 = vld [vmem:[%s328 + $0x1c] sm:$0xf]
      %v345 = vld [vmem:[%s328 + $0x20] sm:$0xf]
      %v346 = vld [vmem:[%s328 + $0x24] sm:$0xf]
      %v347 = vld [vmem:[%s328 + $0x28] sm:$0xf]
      %v348 = vld [vmem:[%s328 + $0x2c] sm:$0xf]
      %v349 = vld [vmem:[%s328 + $0x30] sm:$0xf]
      %v350 = vld [vmem:[%s328 + $0x34] sm:$0xf]
      %v351 = vld [vmem:[%s328 + $0x38] sm:$0xf]
      %v352 = vld [vmem:[%s328 + $0x3c] sm:$0xf]
      %v353 = vld [vmem:[%s1] sm:$0xf]
      %v354 = vld [vmem:[%s1 + $0x4] sm:$0xf]
      %v355 = vld [vmem:[%s2] sm:$0x1]
      %v357 = vlaneseq
      %v358 = vshrl.u32 %v357, 7
      %v359 = vsub.s32 0, %v358
      %v360 = vrot.slane %v355, %v359
      %v378 = vunpack.c.l.b16 %v337
      %v379 = vunpack.c.l.b16 %v338
      %v380 = vunpack.c.l.b16 %v339
      %v381 = vunpack.c.l.b16 %v340
      %v382 = vunpack.c.l.b16 %v341
      %v383 = vunpack.c.l.b16 %v342
      %v384 = vunpack.c.l.b16 %v343
      %v385 = vunpack.c.l.b16 %v344
      %v386 = vunpack.c.l.b16 %v345
      %v387 = vunpack.c.l.b16 %v346
      %v388 = vunpack.c.l.b16 %v347
      %v389 = vunpack.c.l.b16 %v348
      %v390 = vunpack.c.l.b16 %v349
      %v391 = vunpack.c.l.b16 %v350
      %v392 = vunpack.c.l.b16 %v351
      %v393 = vunpack.c.l.b16 %v352
      %v394 = vpack.c.b16 %v379, %v378
      %v395 = vpack.c.b16 %v381, %v380
      %v396 = vpack.c.b16 %v383, %v382
      %v397 = vpack.c.b16 %v385, %v384
      %v398 = vpack.c.b16 %v387, %v386
      %v399 = vpack.c.b16 %v389, %v388
      %v400 = vpack.c.b16 %v391, %v390
      %v401 = vpack.c.b16 %v393, %v392
      %v404 = vunpack.c.l.b16 %v353
      %v405 = vunpack.c.l.b16 %v354
      %v406 = vpack.c.b16 %v405, %v404
      %vm408 = vcmask 130048
      %v410 = vsel %vm408, %v394, 0
      %v413 = vsel %vm408, %v395, 0
      %v416 = vsel %vm408, %v396, 0
      %v419 = vsel %vm408, %v397, 0
      %v422 = vsel %vm408, %v398, 0
      %v425 = vsel %vm408, %v399, 0
      %v428 = vsel %vm408, %v400, 0
      %v431 = vsel %vm408, %v401, 0
      %433 = vmatprep.subr.bf16.mxu0 0
      %434 = vmatpush1.bf16.msra.mxu0 %v406
      %435 = vmatprep.subr.bf16.mxu0 0
      %436 = vmatpush1.bf16.msra.mxu0 0
      %437 = vmatprep.subr.bf16.mxu0 0
      %438 = vmatpush1.bf16.msra.mxu0 0
      %439 = vmatprep.subr.bf16.mxu0 0
      %440 = vmatpush1.bf16.msra.mxu0 0
      %441 = vmatprep.subr.bf16.mxu0 0
      %442 = vmatpush1.bf16.msra.mxu0 0
      %443 = vmatprep.subr.bf16.mxu0 0
      %444 = vmatpush1.bf16.msra.mxu0 0
      %445 = vmatprep.subr.bf16.mxu0 0
      %446 = vmatpush1.bf16.msra.mxu0 0
      %447 = vmatprep.subr.bf16.mxu0 0
      %448 = vmatpush1.bf16.msra.mxu0 0
      %449 = vmatprep.subr.bf16.mxu0 0
      %450 = vmatpush1.bf16.msra.mxu0 0
      %451 = vmatprep.subr.bf16.mxu0 0
      %452 = vmatpush1.bf16.msra.mxu0 0
      %453 = vmatprep.subr.bf16.mxu0 0
      %454 = vmatpush1.bf16.msra.mxu0 0
      %455 = vmatprep.subr.bf16.mxu0 0
      %456 = vmatpush1.bf16.msra.mxu0 0
      %457 = vmatprep.subr.bf16.mxu0 0
      %458 = vmatpush1.bf16.msra.mxu0 0
      %459 = vmatprep.subr.bf16.mxu0 0
      %460 = vmatpush1.bf16.msra.mxu0 0
      %461 = vmatprep.subr.bf16.mxu0 0
      %462 = vmatpush1.bf16.msra.mxu0 0
      %463 = vmatprep.subr.bf16.mxu0 0
      %464 = vmatpush1.bf16.msra.mxu0 0
      %465 = vmatprep.mubr.bf16.mxu0 0
      %466 = vmatmul.mubr.bf16.gmra.mrb[0].mxu0 %v410
      %v467 = vpop.f32.mrb[0].mxu0
      %v468 = vadd.f32 %v360, %v467
      %v469 = vpop.f32.mrb[0].mxu0
      %v470 = vpop.f32.mrb[0].mxu0
      %v471 = vadd.f32 %v360, %v470
      %v472 = vpop.f32.mrb[0].mxu0
      %473 = vmatprep.mubr.bf16.mxu0 0
      %474 = vmatmul.mubr.bf16.gmra.mrb[0].mxu0 %v413
      %v475 = vpop.f32.mrb[0].mxu0
      %v476 = vadd.f32 %v360, %v475
      %v477 = vpop.f32.mrb[0].mxu0
      %v478 = vpop.f32.mrb[0].mxu0
      %v479 = vadd.f32 %v360, %v478
      %v480 = vpop.f32.mrb[0].mxu0
      %481 = vmatprep.mubr.bf16.mxu0 0
      %482 = vmatmul.mubr.bf16.gmra.mrb[0].mxu0 %v416
      %v483 = vpop.f32.mrb[0].mxu0
      %v484 = vadd.f32 %v360, %v483
      %v485 = vpop.f32.mrb[0].mxu0
      %v486 = vpop.f32.mrb[0].mxu0
      %v487 = vadd.f32 %v360, %v486
      %v488 = vpop.f32.mrb[0].mxu0
      %489 = vmatprep.mubr.bf16.mxu0 0
      %490 = vmatmul.mubr.bf16.gmra.mrb[0].mxu0 %v419
      %v491 = vpop.f32.mrb[0].mxu0
      %v492 = vadd.f32 %v360, %v491
      %v493 = vpop.f32.mrb[0].mxu0
      %v494 = vpop.f32.mrb[0].mxu0
      %v495 = vadd.f32 %v360, %v494
      %v496 = vpop.f32.mrb[0].mxu0
      %497 = vmatprep.mubr.bf16.mxu0 0
      %498 = vmatmul.mubr.bf16.gmra.mrb[0].mxu0 %v422
      %v499 = vpop.f32.mrb[0].mxu0
      %v500 = vadd.f32 %v360, %v499
      %v501 = vpop.f32.mrb[0].mxu0
      %v502 = vpop.f32.mrb[0].mxu0
      %v503 = vadd.f32 %v360, %v502
      %v504 = vpop.f32.mrb[0].mxu0
      %505 = vmatprep.mubr.bf16.mxu0 0
      %506 = vmatmul.mubr.bf16.gmra.mrb[0].mxu0 %v425
      %v507 = vpop.f32.mrb[0].mxu0
      %v508 = vadd.f32 %v360, %v507
      %v509 = vpop.f32.mrb[0].mxu0
      %v510 = vpop.f32.mrb[0].mxu0
      %v511 = vadd.f32 %v360, %v510
      %v512 = vpop.f32.mrb[0].mxu0
      %513 = vmatprep.mubr.bf16.mxu0 0
      %514 = vmatmul.mubr.bf16.gmra.mrb[0].mxu0 %v428
      %v515 = vpop.f32.mrb[0].mxu0
      %v516 = vadd.f32 %v360, %v515
      %v517 = vpop.f32.mrb[0].mxu0
      %v518 = vpop.f32.mrb[0].mxu0
      %v519 = vadd.f32 %v360, %v518
      %v520 = vpop.f32.mrb[0].mxu0
      %521 = vmatprep.mubr.bf16.mxu0 0
      %522 = vmatmul.mubr.bf16.gmra.mrb[0].mxu0 %v431
      %v523 = vpop.f32.mrb[0].mxu0
      %v524 = vadd.f32 %v360, %v523
      %v525 = vpop.f32.mrb[0].mxu0
      %v526 = vpop.f32.mrb[0].mxu0
      %v527 = vadd.f32 %v360, %v526
      %v528 = vpop.f32.mrb[0].mxu0
      %529 = vdwg.mxu0
      %v530 = vmax.f32 %v468, 0.0
      %v531 = vmax.f32 %v471, 0.0
      %v532 = vmax.f32 %v476, 0.0
      %v533 = vmax.f32 %v479, 0.0
      %v534 = vmax.f32 %v484, 0.0
      %v535 = vmax.f32 %v487, 0.0
      %v536 = vmax.f32 %v492, 0.0
      %v537 = vmax.f32 %v495, 0.0
      %v538 = vmax.f32 %v500, 0.0
      %v539 = vmax.f32 %v503, 0.0
      %v540 = vmax.f32 %v508, 0.0
      %v541 = vmax.f32 %v511, 0.0
      %v542 = vmax.f32 %v516, 0.0
      %v543 = vmax.f32 %v519, 0.0
      %v544 = vmax.f32 %v524, 0.0
      %v545 = vmax.f32 %v527, 0.0
      %v546 = vpack.c.bf16 %v531, %v530
      %v547 = vpack.c.bf16 %v533, %v532
      %v548 = vpack.c.bf16 %v535, %v534
      %v549 = vpack.c.bf16 %v537, %v536
      %v550 = vpack.c.bf16 %v539, %v538
      %v551 = vpack.c.bf16 %v541, %v540
      %v552 = vpack.c.bf16 %v543, %v542
      %v553 = vpack.c.bf16 %v545, %v544
      %v554 = vld [vmem:[%s3] sm:$0xf]
      %v555 = vld [vmem:[%s3 + $0x4] sm:$0xf]
      %v556 = vld [vmem:[%s3 + $0x8] sm:$0xf]
      %v557 = vld [vmem:[%s3 + $0xc] sm:$0xf]
      %v558 = vld [vmem:[%s3 + $0x10] sm:$0xf]
      %v559 = vld [vmem:[%s3 + $0x14] sm:$0xf]
      %v560 = vld [vmem:[%s3 + $0x18] sm:$0xf]
      %v561 = vld [vmem:[%s3 + $0x1c] sm:$0xf]
      %v562 = vld [vmem:[%s4] sm:$0x1]
      %v564 = vlaneseq
      %v565 = vshrl.u32 %v564, 7
      %v566 = vsub.s32 0, %v565
      %v567 = vrot.slane %v562, %v566
      %v577 = vunpack.c.l.b16 %v554
      %v578 = vunpack.c.l.b16 %v555
      %v579 = vunpack.c.l.b16 %v556
      %v580 = vunpack.c.l.b16 %v557
      %v581 = vunpack.c.l.b16 %v558
      %v582 = vunpack.c.l.b16 %v559
      %v583 = vunpack.c.l.b16 %v560
      %v584 = vunpack.c.l.b16 %v561
      %v585 = vpack.c.b16 %v578, %v577
      %v586 = vpack.c.b16 %v580, %v579
      %v587 = vpack.c.b16 %v582, %v581
      %v588 = vpack.c.b16 %v584, %v583
      %vm593 = vcmask 523264
      %v595 = vsel %vm593, %v546, 0
      %v598 = vsel %vm593, %v547, 0
      %v601 = vsel %vm593, %v548, 0
      %v604 = vsel %vm593, %v549, 0
      %v607 = vsel %vm593, %v550, 0
      %v610 = vsel %vm593, %v551, 0
      %v613 = vsel %vm593, %v552, 0
      %v616 = vsel %vm593, %v553, 0
      %618 = vmatprep.subr.bf16.mxu0 0
      %619 = vmatpush1.bf16.msra.mxu0 %v585
      %620 = vmatprep.subr.bf16.mxu0 0
      %621 = vmatpush1.bf16.msra.mxu0 %v586
      %622 = vmatprep.subr.bf16.mxu0 0
      %623 = vmatpush1.bf16.msra.mxu0 %v587
      %624 = vmatprep.subr.bf16.mxu0 0
      %625 = vmatpush1.bf16.msra.mxu0 %v588
      %626 = vmatprep.subr.bf16.mxu0 0
      %627 = vmatpush1.bf16.msra.mxu0 0
      %628 = vmatprep.subr.bf16.mxu0 0
      %629 = vmatpush1.bf16.msra.mxu0 0
      %630 = vmatprep.subr.bf16.mxu0 0
      %631 = vmatpush1.bf16.msra.mxu0 0
      %632 = vmatprep.subr.bf16.mxu0 0
      %633 = vmatpush1.bf16.msra.mxu0 0
      %634 = vmatprep.subr.bf16.mxu0 0
      %635 = vmatpush1.bf16.msra.mxu0 0
      %636 = vmatprep.subr.bf16.mxu0 0
      %637 = vmatpush1.bf16.msra.mxu0 0
      %638 = vmatprep.subr.bf16.mxu0 0
      %639 = vmatpush1.bf16.msra.mxu0 0
      %640 = vmatprep.subr.bf16.mxu0 0
      %641 = vmatpush1.bf16.msra.mxu0 0
      %642 = vmatprep.subr.bf16.mxu0 0
      %643 = vmatpush1.bf16.msra.mxu0 0
      %644 = vmatprep.subr.bf16.mxu0 0
      %645 = vmatpush1.bf16.msra.mxu0 0
      %646 = vmatprep.subr.bf16.mxu0 0
      %647 = vmatpush1.bf16.msra.mxu0 0
      %648 = vmatprep.subr.bf16.mxu0 0
      %649 = vmatpush1.bf16.msra.mxu0 0
      %650 = vmatprep.mubr.bf16.mxu0 0
      %651 = vmatmul.mubr.bf16.gmra.mrb[0].mxu0 %v595
      %v652 = vpop.f32.mrb[0].mxu0
      %v653 = vadd.f32 %v567, %v652
      %v654 = vpop.f32.mrb[0].mxu0
      %v655 = vpop.f32.mrb[0].mxu0
      %v656 = vadd.f32 %v567, %v655
      %v657 = vpop.f32.mrb[0].mxu0
      %658 = vmatprep.mubr.bf16.mxu0 0
      %659 = vmatmul.mubr.bf16.gmra.mrb[0].mxu0 %v598
      %v660 = vpop.f32.mrb[0].mxu0
      %v661 = vadd.f32 %v567, %v660
      %v662 = vpop.f32.mrb[0].mxu0
      %v663 = vpop.f32.mrb[0].mxu0
      %v664 = vadd.f32 %v567, %v663
      %v665 = vpop.f32.mrb[0].mxu0
      %666 = vmatprep.mubr.bf16.mxu0 0
      %667 = vmatmul.mubr.bf16.gmra.mrb[0].mxu0 %v601
      %v668 = vpop.f32.mrb[0].mxu0
      %v669 = vadd.f32 %v567, %v668
      %v670 = vpop.f32.mrb[0].mxu0
      %v671 = vpop.f32.mrb[0].mxu0
      %v672 = vadd.f32 %v567, %v671
      %v673 = vpop.f32.mrb[0].mxu0
      %674 = vmatprep.mubr.bf16.mxu0 0
      %675 = vmatmul.mubr.bf16.gmra.mrb[0].mxu0 %v604
      %v676 = vpop.f32.mrb[0].mxu0
      %v677 = vadd.f32 %v567, %v676
      %v678 = vpop.f32.mrb[0].mxu0
      %v679 = vpop.f32.mrb[0].mxu0
      %v680 = vadd.f32 %v567, %v679
      %v681 = vpop.f32.mrb[0].mxu0
      %682 = vmatprep.mubr.bf16.mxu0 0
      %683 = vmatmul.mubr.bf16.gmra.mrb[0].mxu0 %v607
      %v684 = vpop.f32.mrb[0].mxu0
      %v685 = vadd.f32 %v567, %v684
      %v686 = vpop.f32.mrb[0].mxu0
      %v687 = vpop.f32.mrb[0].mxu0
      %v688 = vadd.f32 %v567, %v687
      %v689 = vpop.f32.mrb[0].mxu0
      %690 = vmatprep.mubr.bf16.mxu0 0
      %691 = vmatmul.mubr.bf16.gmra.mrb[0].mxu0 %v610
      %v692 = vpop.f32.mrb[0].mxu0
      %v693 = vadd.f32 %v567, %v692
      %v694 = vpop.f32.mrb[0].mxu0
      %v695 = vpop.f32.mrb[0].mxu0
      %v696 = vadd.f32 %v567, %v695
      %v697 = vpop.f32.mrb[0].mxu0
      %698 = vmatprep.mubr.bf16.mxu0 0
      %699 = vmatmul.mubr.bf16.gmra.mrb[0].mxu0 %v613
      %v700 = vpop.f32.mrb[0].mxu0
      %v701 = vadd.f32 %v567, %v700
      %v702 = vpop.f32.mrb[0].mxu0
      %v703 = vpop.f32.mrb[0].mxu0
      %v704 = vadd.f32 %v567, %v703
      %v705 = vpop.f32.mrb[0].mxu0
      %706 = vmatprep.mubr.bf16.mxu0 0
      %707 = vmatmul.mubr.bf16.gmra.mrb[0].mxu0 %v616
      %v708 = vpop.f32.mrb[0].mxu0
      %v709 = vadd.f32 %v567, %v708
      %v710 = vpop.f32.mrb[0].mxu0
      %v711 = vpop.f32.mrb[0].mxu0
      %v712 = vadd.f32 %v567, %v711
      %v713 = vpop.f32.mrb[0].mxu0
      %714 = vdwg.mxu0
      %v715 = vmax.f32 %v653, 0.0
      %v716 = vmax.f32 %v656, 0.0
      %v717 = vmax.f32 %v661, 0.0
      %v718 = vmax.f32 %v664, 0.0
      %v719 = vmax.f32 %v669, 0.0
      %v720 = vmax.f32 %v672, 0.0
      %v721 = vmax.f32 %v677, 0.0
      %v722 = vmax.f32 %v680, 0.0
      %v723 = vmax.f32 %v685, 0.0
      %v724 = vmax.f32 %v688, 0.0
      %v725 = vmax.f32 %v693, 0.0
      %v726 = vmax.f32 %v696, 0.0
      %v727 = vmax.f32 %v701, 0.0
      %v728 = vmax.f32 %v704, 0.0
      %v729 = vmax.f32 %v709, 0.0
      %v730 = vmax.f32 %v712, 0.0
      %v731 = vpack.c.bf16 %v716, %v715
      %v732 = vpack.c.bf16 %v718, %v717
      %v733 = vpack.c.bf16 %v720, %v719
      %v734 = vpack.c.bf16 %v722, %v721
      %v735 = vpack.c.bf16 %v724, %v723
      %v736 = vpack.c.bf16 %v726, %v725
      %v737 = vpack.c.bf16 %v728, %v727
      %v738 = vpack.c.bf16 %v730, %v729
      %v739 = vld [vmem:[%s5] sm:$0xff]
      %v740 = vld [vmem:[%s5 + $0x8] sm:$0xff]
      %v741 = vld [vmem:[%s5 + $0x10] sm:$0xff]
      %v742 = vld [vmem:[%s5 + $0x18] sm:$0xff]
      %v743 = vld [vmem:[%s5 + $0x20] sm:$0xff]
      %v744 = vld [vmem:[%s5 + $0x28] sm:$0xff]
      %v745 = vld [vmem:[%s5 + $0x30] sm:$0xff]
      %v746 = vld [vmem:[%s5 + $0x38] sm:$0xff]
      %v747 = vld [vmem:[%s5 + $0x40] sm:$0xff]
      %v748 = vld [vmem:[%s5 + $0x48] sm:$0xff]
      %v749 = vld [vmem:[%s5 + $0x50] sm:$0xff]
      %v750 = vld [vmem:[%s5 + $0x58] sm:$0xff]
      %v751 = vld [vmem:[%s5 + $0x60] sm:$0xff]
      %v752 = vld [vmem:[%s5 + $0x68] sm:$0xff]
      %v753 = vld [vmem:[%s5 + $0x70] sm:$0xff]
      %v754 = vld [vmem:[%s5 + $0x78] sm:$0xff]
      %v755 = vld [vmem:[%s6] sm:$0x3]
      %v757 = vlaneseq
      %v758 = vshrl.u32 %v757, 7
      %v759 = vsub.s32 0, %v758
      %v760 = vrot.slane %v755, %v759
      %v761 = vlaneseq
      %v762 = vshrl.u32 %v761, 7
      %v763 = vsub.s32 1, %v762
      %v764 = vrot.slane %v755, %v763
      %v783 = vunpack.c.l.b16 %v739
      %v784 = vunpack.c.h.b16 %v739
      %v785 = vunpack.c.l.b16 %v740
      %v786 = vunpack.c.h.b16 %v740
      %v787 = vunpack.c.l.b16 %v741
      %v788 = vunpack.c.h.b16 %v741
      %v789 = vunpack.c.l.b16 %v742
      %v790 = vunpack.c.h.b16 %v742
      %v791 = vunpack.c.l.b16 %v743
      %v792 = vunpack.c.h.b16 %v743
      %v793 = vunpack.c.l.b16 %v744
      %v794 = vunpack.c.h.b16 %v744
      %v795 = vunpack.c.l.b16 %v745
      %v796 = vunpack.c.h.b16 %v745
      %v797 = vunpack.c.l.b16 %v746
      %v798 = vunpack.c.h.b16 %v746
      %v799 = vunpack.c.l.b16 %v747
      %v800 = vunpack.c.h.b16 %v747
      %v801 = vunpack.c.l.b16 %v748
      %v802 = vunpack.c.h.b16 %v748
      %v803 = vunpack.c.l.b16 %v749
      %v804 = vunpack.c.h.b16 %v749
      %v805 = vunpack.c.l.b16 %v750
      %v806 = vunpack.c.h.b16 %v750
      %v807 = vunpack.c.l.b16 %v751
      %v808 = vunpack.c.h.b16 %v751
      %v809 = vunpack.c.l.b16 %v752
      %v810 = vunpack.c.h.b16 %v752
      %v811 = vunpack.c.l.b16 %v753
      %v812 = vunpack.c.h.b16 %v753
      %v813 = vunpack.c.l.b16 %v754
      %v814 = vunpack.c.h.b16 %v754
      %v815 = vpack.c.b16 %v785, %v783
      %v816 = vpack.c.b16 %v786, %v784
      %v817 = vpack.c.b16 %v789, %v787
      %v818 = vpack.c.b16 %v790, %v788
      %v819 = vpack.c.b16 %v793, %v791
      %v820 = vpack.c.b16 %v794, %v792
      %v821 = vpack.c.b16 %v797, %v795
      %v822 = vpack.c.b16 %v798, %v796
      %v823 = vpack.c.b16 %v801, %v799
      %v824 = vpack.c.b16 %v802, %v800
      %v825 = vpack.c.b16 %v805, %v803
      %v826 = vpack.c.b16 %v806, %v804
      %v827 = vpack.c.b16 %v809, %v807
      %v828 = vpack.c.b16 %v810, %v808
      %v829 = vpack.c.b16 %v813, %v811
      %v830 = vpack.c.b16 %v814, %v812
      %847 = vmatprep.subr.bf16.mxu0 %v816
      %848 = vmatpush1.bf16.msra.mxu0 %v815
      %849 = vmatprep.subr.bf16.mxu0 %v818
      %850 = vmatpush1.bf16.msra.mxu0 %v817
      %851 = vmatprep.subr.bf16.mxu0 %v820
      %852 = vmatpush1.bf16.msra.mxu0 %v819
      %853 = vmatprep.subr.bf16.mxu0 %v822
      %854 = vmatpush1.bf16.msra.mxu0 %v821
      %855 = vmatprep.subr.bf16.mxu0 %v824
      %856 = vmatpush1.bf16.msra.mxu0 %v823
      %857 = vmatprep.subr.bf16.mxu0 %v826
      %858 = vmatpush1.bf16.msra.mxu0 %v825
      %859 = vmatprep.subr.bf16.mxu0 %v828
      %860 = vmatpush1.bf16.msra.mxu0 %v827
      %861 = vmatprep.subr.bf16.mxu0 %v830
      %862 = vmatpush1.bf16.msra.mxu0 %v829
      %863 = vmatprep.subr.bf16.mxu0 0
      %864 = vmatpush1.bf16.msra.mxu0 0
      %865 = vmatprep.subr.bf16.mxu0 0
      %866 = vmatpush1.bf16.msra.mxu0 0
      %867 = vmatprep.subr.bf16.mxu0 0
      %868 = vmatpush1.bf16.msra.mxu0 0
      %869 = vmatprep.subr.bf16.mxu0 0
      %870 = vmatpush1.bf16.msra.mxu0 0
      %871 = vmatprep.subr.bf16.mxu0 0
      %872 = vmatpush1.bf16.msra.mxu0 0
      %873 = vmatprep.subr.bf16.mxu0 0
      %874 = vmatpush1.bf16.msra.mxu0 0
      %875 = vmatprep.subr.bf16.mxu0 0
      %876 = vmatpush1.bf16.msra.mxu0 0
      %877 = vmatprep.subr.bf16.mxu0 0
      %878 = vmatpush1.bf16.msra.mxu0 0
      %879 = vmatprep.mubr.bf16.mxu0 0
      %880 = vmatmul.mubr.bf16.gmra.mrb[0].mxu0 %v731
      %v881 = vpop.f32.mrb[0].mxu0
      %v882 = vadd.f32 %v760, %v881
      %v883 = vpop.f32.mrb[0].mxu0
      %v884 = vadd.f32 %v764, %v883
      %v885 = vpop.f32.mrb[0].mxu0
      %v886 = vadd.f32 %v760, %v885
      %v887 = vpop.f32.mrb[0].mxu0
      %v888 = vadd.f32 %v764, %v887
      %889 = vmatprep.mubr.bf16.mxu0 0
      %890 = vmatmul.mubr.bf16.gmra.mrb[0].mxu0 %v732
      %v891 = vpop.f32.mrb[0].mxu0
      %v892 = vadd.f32 %v760, %v891
      %v893 = vpop.f32.mrb[0].mxu0
      %v894 = vadd.f32 %v764, %v893
      %v895 = vpop.f32.mrb[0].mxu0
      %v896 = vadd.f32 %v760, %v895
      %v897 = vpop.f32.mrb[0].mxu0
      %v898 = vadd.f32 %v764, %v897
      %899 = vmatprep.mubr.bf16.mxu0 0
      %900 = vmatmul.mubr.bf16.gmra.mrb[0].mxu0 %v733
      %v901 = vpop.f32.mrb[0].mxu0
      %v902 = vadd.f32 %v760, %v901
      %v903 = vpop.f32.mrb[0].mxu0
      %v904 = vadd.f32 %v764, %v903
      %v905 = vpop.f32.mrb[0].mxu0
      %v906 = vadd.f32 %v760, %v905
      %v907 = vpop.f32.mrb[0].mxu0
      %v908 = vadd.f32 %v764, %v907
      %909 = vmatprep.mubr.bf16.mxu0 0
      %910 = vmatmul.mubr.bf16.gmra.mrb[0].mxu0 %v734
      %v911 = vpop.f32.mrb[0].mxu0
      %v912 = vadd.f32 %v760, %v911
      %v913 = vpop.f32.mrb[0].mxu0
      %v914 = vadd.f32 %v764, %v913
      %v915 = vpop.f32.mrb[0].mxu0
      %v916 = vadd.f32 %v760, %v915
      %v917 = vpop.f32.mrb[0].mxu0
      %v918 = vadd.f32 %v764, %v917
      %919 = vmatprep.mubr.bf16.mxu0 0
      %920 = vmatmul.mubr.bf16.gmra.mrb[0].mxu0 %v735
      %v921 = vpop.f32.mrb[0].mxu0
      %v922 = vadd.f32 %v760, %v921
      %v923 = vpop.f32.mrb[0].mxu0
      %v924 = vadd.f32 %v764, %v923
      %v925 = vpop.f32.mrb[0].mxu0
      %v926 = vadd.f32 %v760, %v925
      %v927 = vpop.f32.mrb[0].mxu0
      %v928 = vadd.f32 %v764, %v927
      %929 = vmatprep.mubr.bf16.mxu0 0
      %930 = vmatmul.mubr.bf16.gmra.mrb[0].mxu0 %v736
      %v931 = vpop.f32.mrb[0].mxu0
      %v932 = vadd.f32 %v760, %v931
      %v933 = vpop.f32.mrb[0].mxu0
      %v934 = vadd.f32 %v764, %v933
      %v935 = vpop.f32.mrb[0].mxu0
      %v936 = vadd.f32 %v760, %v935
      %v937 = vpop.f32.mrb[0].mxu0
      %v938 = vadd.f32 %v764, %v937
      %939 = vmatprep.mubr.bf16.mxu0 0
      %940 = vmatmul.mubr.bf16.gmra.mrb[0].mxu0 %v737
      %v941 = vpop.f32.mrb[0].mxu0
      %v942 = vadd.f32 %v760, %v941
      %v943 = vpop.f32.mrb[0].mxu0
      %v944 = vadd.f32 %v764, %v943
      %v945 = vpop.f32.mrb[0].mxu0
      %v946 = vadd.f32 %v760, %v945
      %v947 = vpop.f32.mrb[0].mxu0
      %v948 = vadd.f32 %v764, %v947
      %949 = vmatprep.mubr.bf16.mxu0 0
      %950 = vmatmul.mubr.bf16.gmra.mrb[0].mxu0 %v738
      %v951 = vpop.f32.mrb[0].mxu0
      %v952 = vadd.f32 %v760, %v951
      %v953 = vpop.f32.mrb[0].mxu0
      %v954 = vadd.f32 %v764, %v953
      %v955 = vpop.f32.mrb[0].mxu0
      %v956 = vadd.f32 %v760, %v955
      %v957 = vpop.f32.mrb[0].mxu0
      %v958 = vadd.f32 %v764, %v957
      %959 = vdwg.mxu0
      %v960 = vmax.f32 %v882, 0.0
      %v961 = vmax.f32 %v884, 0.0
      %v962 = vmax.f32 %v886, 0.0
      %v963 = vmax.f32 %v888, 0.0
      %v964 = vmax.f32 %v892, 0.0
      %v965 = vmax.f32 %v894, 0.0
      %v966 = vmax.f32 %v896, 0.0
      %v967 = vmax.f32 %v898, 0.0
      %v968 = vmax.f32 %v902, 0.0
      %v969 = vmax.f32 %v904, 0.0
      %v970 = vmax.f32 %v906, 0.0
      %v971 = vmax.f32 %v908, 0.0
      %v972 = vmax.f32 %v912, 0.0
      %v973 = vmax.f32 %v914, 0.0
      %v974 = vmax.f32 %v916, 0.0
      %v975 = vmax.f32 %v918, 0.0
      %v976 = vmax.f32 %v922, 0.0
      %v977 = vmax.f32 %v924, 0.0
      %v978 = vmax.f32 %v926, 0.0
      %v979 = vmax.f32 %v928, 0.0
      %v980 = vmax.f32 %v932, 0.0
      %v981 = vmax.f32 %v934, 0.0
      %v982 = vmax.f32 %v936, 0.0
      %v983 = vmax.f32 %v938, 0.0
      %v984 = vmax.f32 %v942, 0.0
      %v985 = vmax.f32 %v944, 0.0
      %v986 = vmax.f32 %v946, 0.0
      %v987 = vmax.f32 %v948, 0.0
      %v988 = vmax.f32 %v952, 0.0
      %v989 = vmax.f32 %v954, 0.0
      %v990 = vmax.f32 %v956, 0.0
      %v991 = vmax.f32 %v958, 0.0
      %v992 = vpack.c.bf16 %v962, %v960
      %v993 = vpack.c.bf16 %v963, %v961
      %v994 = vpack.c.bf16 %v966, %v964
      %v995 = vpack.c.bf16 %v967, %v965
      %v996 = vpack.c.bf16 %v970, %v968
      %v997 = vpack.c.bf16 %v971, %v969
      %v998 = vpack.c.bf16 %v974, %v972
      %v999 = vpack.c.bf16 %v975, %v973
      %v1000 = vpack.c.bf16 %v978, %v976
      %v1001 = vpack.c.bf16 %v979, %v977
      %v1002 = vpack.c.bf16 %v982, %v980
      %v1003 = vpack.c.bf16 %v983, %v981
      %v1004 = vpack.c.bf16 %v986, %v984
      %v1005 = vpack.c.bf16 %v987, %v985
      %v1006 = vpack.c.bf16 %v990, %v988
      %v1007 = vpack.c.bf16 %v991, %v989
      %v1008 = vld [vmem:[%s7] sm:$0xf]
      %v1009 = vld [vmem:[%s7 + $0x4] sm:$0xf]
      %v1010 = vld [vmem:[%s7 + $0x8] sm:$0xf]
      %v1011 = vld [vmem:[%s7 + $0xc] sm:$0xf]
      %v1012 = vld [vmem:[%s7 + $0x10] sm:$0xf]
      %v1013 = vld [vmem:[%s7 + $0x14] sm:$0xf]
      %v1014 = vld [vmem:[%s7 + $0x18] sm:$0xf]
      %v1015 = vld [vmem:[%s7 + $0x1c] sm:$0xf]
      %v1016 = vld [vmem:[%s7 + $0x20] sm:$0xf]
      %v1017 = vld [vmem:[%s7 + $0x24] sm:$0xf]
      %v1018 = vld [vmem:[%s7 + $0x28] sm:$0xf]
      %v1019 = vld [vmem:[%s7 + $0x2c] sm:$0xf]
      %v1020 = vld [vmem:[%s7 + $0x30] sm:$0xf]
      %v1021 = vld [vmem:[%s7 + $0x34] sm:$0xf]
      %v1022 = vld [vmem:[%s7 + $0x38] sm:$0xf]
      %v1023 = vld [vmem:[%s7 + $0x3c] sm:$0xf]
      %v1024 = vld [vmem:[%s7 + $0x40] sm:$0xf]
      %v1025 = vld [vmem:[%s7 + $0x44] sm:$0xf]
      %v1026 = vld [vmem:[%s7 + $0x48] sm:$0xf]
      %v1027 = vld [vmem:[%s7 + $0x4c] sm:$0xf]
      %v1028 = vld [vmem:[%s7 + $0x50] sm:$0xf]
      %v1029 = vld [vmem:[%s7 + $0x54] sm:$0xf]
      %v1030 = vld [vmem:[%s7 + $0x58] sm:$0xf]
      %v1031 = vld [vmem:[%s7 + $0x5c] sm:$0xf]
      %v1032 = vld [vmem:[%s7 + $0x60] sm:$0xf]
      %v1033 = vld [vmem:[%s7 + $0x64] sm:$0xf]
      %v1034 = vld [vmem:[%s7 + $0x68] sm:$0xf]
      %v1035 = vld [vmem:[%s7 + $0x6c] sm:$0xf]
      %v1036 = vld [vmem:[%s7 + $0x70] sm:$0xf]
      %v1037 = vld [vmem:[%s7 + $0x74] sm:$0xf]
      %v1038 = vld [vmem:[%s7 + $0x78] sm:$0xf]
      %v1039 = vld [vmem:[%s7 + $0x7c] sm:$0xf]
      %v1040 = vld [vmem:[%s8] sm:$0x1]
      %v1042 = vlaneseq
      %v1043 = vshrl.u32 %v1042, 7
      %v1044 = vsub.s32 0, %v1043
      %v1045 = vrot.slane %v1040, %v1044
      %v1079 = vunpack.c.l.b16 %v1008
      %v1080 = vunpack.c.l.b16 %v1009
      %v1081 = vunpack.c.l.b16 %v1010
      %v1082 = vunpack.c.l.b16 %v1011
      %v1083 = vunpack.c.l.b16 %v1012
      %v1084 = vunpack.c.l.b16 %v1013
      %v1085 = vunpack.c.l.b16 %v1014
      %v1086 = vunpack.c.l.b16 %v1015
      %v1087 = vunpack.c.l.b16 %v1016
      %v1088 = vunpack.c.l.b16 %v1017
      %v1089 = vunpack.c.l.b16 %v1018
      %v1090 = vunpack.c.l.b16 %v1019
      %v1091 = vunpack.c.l.b16 %v1020
      %v1092 = vunpack.c.l.b16 %v1021
      %v1093 = vunpack.c.l.b16 %v1022
      %v1094 = vunpack.c.l.b16 %v1023
      %v1095 = vunpack.c.l.b16 %v1024
      %v1096 = vunpack.c.l.b16 %v1025
      %v1097 = vunpack.c.l.b16 %v1026
      %v1098 = vunpack.c.l.b16 %v1027
      %v1099 = vunpack.c.l.b16 %v1028
      %v1100 = vunpack.c.l.b16 %v1029
      %v1101 = vunpack.c.l.b16 %v1030
      %v1102 = vunpack.c.l.b16 %v1031
      %v1103 = vunpack.c.l.b16 %v1032
      %v1104 = vunpack.c.l.b16 %v1033
      %v1105 = vunpack.c.l.b16 %v1034
      %v1106 = vunpack.c.l.b16 %v1035
      %v1107 = vunpack.c.l.b16 %v1036
      %v1108 = vunpack.c.l.b16 %v1037
      %v1109 = vunpack.c.l.b16 %v1038
      %v1110 = vunpack.c.l.b16 %v1039
      %v1111 = vpack.c.b16 %v1080, %v1079
      %v1112 = vpack.c.b16 %v1082, %v1081
      %v1113 = vpack.c.b16 %v1084, %v1083
      %v1114 = vpack.c.b16 %v1086, %v1085
      %v1115 = vpack.c.b16 %v1088, %v1087
      %v1116 = vpack.c.b16 %v1090, %v1089
      %v1117 = vpack.c.b16 %v1092, %v1091
      %v1118 = vpack.c.b16 %v1094, %v1093
      %v1119 = vpack.c.b16 %v1096, %v1095
      %v1120 = vpack.c.b16 %v1098, %v1097
      %v1121 = vpack.c.b16 %v1100, %v1099
      %v1122 = vpack.c.b16 %v1102, %v1101
      %v1123 = vpack.c.b16 %v1104, %v1103
      %v1124 = vpack.c.b16 %v1106, %v1105
      %v1125 = vpack.c.b16 %v1108, %v1107
      %v1126 = vpack.c.b16 %v1110, %v1109
      %1143 = vmatprep.subr.bf16.mxu0 0
      %1144 = vmatpush1.bf16.msra.mxu0 %v1111
      %1145 = vmatprep.subr.bf16.mxu0 0
      %1146 = vmatpush1.bf16.msra.mxu0 %v1112
      %1147 = vmatprep.subr.bf16.mxu0 0
      %1148 = vmatpush1.bf16.msra.mxu0 %v1113
      %1149 = vmatprep.subr.bf16.mxu0 0
      %1150 = vmatpush1.bf16.msra.mxu0 %v1114
      %1151 = vmatprep.subr.bf16.mxu0 0
      %1152 = vmatpush1.bf16.msra.mxu0 %v1115
      %1153 = vmatprep.subr.bf16.mxu0 0
      %1154 = vmatpush1.bf16.msra.mxu0 %v1116
      %1155 = vmatprep.subr.bf16.mxu0 0
      %1156 = vmatpush1.bf16.msra.mxu0 %v1117
      %1157 = vmatprep.subr.bf16.mxu0 0
      %1158 = vmatpush1.bf16.msra.mxu0 %v1118
      %1159 = vmatprep.subr.bf16.mxu0 0
      %1160 = vmatpush1.bf16.msra.mxu0 %v1119
      %1161 = vmatprep.subr.bf16.mxu0 0
      %1162 = vmatpush1.bf16.msra.mxu0 %v1120
      %1163 = vmatprep.subr.bf16.mxu0 0
      %1164 = vmatpush1.bf16.msra.mxu0 %v1121
      %1165 = vmatprep.subr.bf16.mxu0 0
      %1166 = vmatpush1.bf16.msra.mxu0 %v1122
      %1167 = vmatprep.subr.bf16.mxu0 0
      %1168 = vmatpush1.bf16.msra.mxu0 %v1123
      %1169 = vmatprep.subr.bf16.mxu0 0
      %1170 = vmatpush1.bf16.msra.mxu0 %v1124
      %1171 = vmatprep.subr.bf16.mxu0 0
      %1172 = vmatpush1.bf16.msra.mxu0 %v1125
      %1173 = vmatprep.subr.bf16.mxu0 0
      %1174 = vmatpush1.bf16.msra.mxu0 %v1126
      %1175 = vmatprep.mubr.bf16.mxu0 %v993
      %1176 = vmatmul.mubr.bf16.gmra.mrb[0].mxu0 %v992
      %v1177 = vpop.f32.mrb[0].mxu0
      %v1178 = vadd.f32 %v1045, %v1177
      %v1179 = vpop.f32.mrb[0].mxu0
      %v1180 = vpop.f32.mrb[0].mxu0
      %v1181 = vadd.f32 %v1045, %v1180
      %v1182 = vpop.f32.mrb[0].mxu0
      %1183 = vmatprep.mubr.bf16.mxu0 %v995
      %1184 = vmatmul.mubr.bf16.gmra.mrb[0].mxu0 %v994
      %v1185 = vpop.f32.mrb[0].mxu0
      %v1186 = vadd.f32 %v1045, %v1185
      %v1187 = vpop.f32.mrb[0].mxu0
      %v1188 = vpop.f32.mrb[0].mxu0
      %v1189 = vadd.f32 %v1045, %v1188
      %v1190 = vpop.f32.mrb[0].mxu0
      %1191 = vmatprep.mubr.bf16.mxu0 %v997
      %1192 = vmatmul.mubr.bf16.gmra.mrb[0].mxu0 %v996
      %v1193 = vpop.f32.mrb[0].mxu0
      %v1194 = vadd.f32 %v1045, %v1193
      %v1195 = vpop.f32.mrb[0].mxu0
      %v1196 = vpop.f32.mrb[0].mxu0
      %v1197 = vadd.f32 %v1045, %v1196
      %v1198 = vpop.f32.mrb[0].mxu0
      %1199 = vmatprep.mubr.bf16.mxu0 %v999
      %1200 = vmatmul.mubr.bf16.gmra.mrb[0].mxu0 %v998
      %v1201 = vpop.f32.mrb[0].mxu0
      %v1202 = vadd.f32 %v1045, %v1201
      %v1203 = vpop.f32.mrb[0].mxu0
      %v1204 = vpop.f32.mrb[0].mxu0
      %v1205 = vadd.f32 %v1045, %v1204
      %v1206 = vpop.f32.mrb[0].mxu0
      %1207 = vmatprep.mubr.bf16.mxu0 %v1001
      %1208 = vmatmul.mubr.bf16.gmra.mrb[0].mxu0 %v1000
      %v1209 = vpop.f32.mrb[0].mxu0
      %v1210 = vadd.f32 %v1045, %v1209
      %v1211 = vpop.f32.mrb[0].mxu0
      %v1212 = vpop.f32.mrb[0].mxu0
      %v1213 = vadd.f32 %v1045, %v1212
      %v1214 = vpop.f32.mrb[0].mxu0
      %1215 = vmatprep.mubr.bf16.mxu0 %v1003
      %1216 = vmatmul.mubr.bf16.gmra.mrb[0].mxu0 %v1002
      %v1217 = vpop.f32.mrb[0].mxu0
      %v1218 = vadd.f32 %v1045, %v1217
      %v1219 = vpop.f32.mrb[0].mxu0
      %v1220 = vpop.f32.mrb[0].mxu0
      %v1221 = vadd.f32 %v1045, %v1220
      %v1222 = vpop.f32.mrb[0].mxu0
      %1223 = vmatprep.mubr.bf16.mxu0 %v1005
      %1224 = vmatmul.mubr.bf16.gmra.mrb[0].mxu0 %v1004
      %v1225 = vpop.f32.mrb[0].mxu0
      %v1226 = vadd.f32 %v1045, %v1225
      %v1227 = vpop.f32.mrb[0].mxu0
      %v1228 = vpop.f32.mrb[0].mxu0
      %v1229 = vadd.f32 %v1045, %v1228
      %v1230 = vpop.f32.mrb[0].mxu0
      %1231 = vmatprep.mubr.bf16.mxu0 %v1007
      %1232 = vmatmul.mubr.bf16.gmra.mrb[0].mxu0 %v1006
      %v1233 = vpop.f32.mrb[0].mxu0
      %v1234 = vadd.f32 %v1045, %v1233
      %v1235 = vpop.f32.mrb[0].mxu0
      %v1236 = vpop.f32.mrb[0].mxu0
      %v1237 = vadd.f32 %v1045, %v1236
      %v1238 = vpop.f32.mrb[0].mxu0
      %1239 = vdwg.mxu0
      %v1240 = vpack.c.bf16 %v1181, %v1178
      %v1241 = vpack.c.bf16 %v1189, %v1186
      %v1242 = vpack.c.bf16 %v1197, %v1194
      %v1243 = vpack.c.bf16 %v1205, %v1202
      %v1244 = vpack.c.bf16 %v1213, %v1210
      %v1245 = vpack.c.bf16 %v1221, %v1218
      %v1246 = vpack.c.bf16 %v1229, %v1226
      %v1247 = vpack.c.bf16 %v1237, %v1234
      %v1256 = vunpack.c.l.b16 %v1240
      %v1257 = vunpack.c.h.b16 %v1240
      %v1258 = vunpack.c.l.b16 %v1241
      %v1259 = vunpack.c.h.b16 %v1241
      %v1260 = vunpack.c.l.b16 %v1242
      %v1261 = vunpack.c.h.b16 %v1242
      %v1262 = vunpack.c.l.b16 %v1243
      %v1263 = vunpack.c.h.b16 %v1243
      %v1264 = vunpack.c.l.b16 %v1244
      %v1265 = vunpack.c.h.b16 %v1244
      %v1266 = vunpack.c.l.b16 %v1245
      %v1267 = vunpack.c.h.b16 %v1245
      %v1268 = vunpack.c.l.b16 %v1246
      %v1269 = vunpack.c.h.b16 %v1246
      %v1270 = vunpack.c.l.b16 %v1247
      %v1271 = vunpack.c.h.b16 %v1247
      %v1272 = vpack.c.b16 %v1256, %v1256
      %v1273 = vpack.c.b16 %v1257, %v1257
      %v1274 = vpack.c.b16 %v1258, %v1258
      %v1275 = vpack.c.b16 %v1259, %v1259
      %v1276 = vpack.c.b16 %v1260, %v1260
      %v1277 = vpack.c.b16 %v1261, %v1261
      %v1278 = vpack.c.b16 %v1262, %v1262
      %v1279 = vpack.c.b16 %v1263, %v1263
      %v1280 = vpack.c.b16 %v1264, %v1264
      %v1281 = vpack.c.b16 %v1265, %v1265
      %v1282 = vpack.c.b16 %v1266, %v1266
      %v1283 = vpack.c.b16 %v1267, %v1267
      %v1284 = vpack.c.b16 %v1268, %v1268
      %v1285 = vpack.c.b16 %v1269, %v1269
      %v1286 = vpack.c.b16 %v1270, %v1270
      %v1287 = vpack.c.b16 %v1271, %v1271
      %1304 = vst [vmem:[%s334] sm:$0xf] %v1272
      %1305 = vst [vmem:[%s334 + $0x4] sm:$0xf] %v1273
      %1306 = vst [vmem:[%s334 + $0x8] sm:$0xf] %v1274
      %1307 = vst [vmem:[%s334 + $0xc] sm:$0xf] %v1275
      %1308 = vst [vmem:[%s334 + $0x10] sm:$0xf] %v1276
      %1309 = vst [vmem:[%s334 + $0x14] sm:$0xf] %v1277
      %1310 = vst [vmem:[%s334 + $0x18] sm:$0xf] %v1278
      %1311 = vst [vmem:[%s334 + $0x1c] sm:$0xf] %v1279
      %1312 = vst [vmem:[%s334 + $0x20] sm:$0xf] %v1280
      %1313 = vst [vmem:[%s334 + $0x24] sm:$0xf] %v1281
      %1314 = vst [vmem:[%s334 + $0x28] sm:$0xf] %v1282
      %1315 = vst [vmem:[%s334 + $0x2c] sm:$0xf] %v1283
      %1316 = vst [vmem:[%s334 + $0x30] sm:$0xf] %v1284
      %1317 = vst [vmem:[%s334 + $0x34] sm:$0xf] %v1285
      %1318 = vst [vmem:[%s334 + $0x38] sm:$0xf] %v1286
      %1319 = vst [vmem:[%s334 + $0x3c] sm:$0xf] %v1287
      %s1320 = smul.u32 16, %s20
      %p1321 = scmp.lt.s32.totalorder %s1320, 31
      %s1322 = scalar_select %p1321, %s1320, 31
      %s1323 = smul.addr %s1322, 4
      %s1324 = scalar_lea.vmem %s9, %s1323
      // Predicated region
      $region57: #{_forward_core.1} parent=55 // pred_check
        %p1325 = pneg %p232
      $region58: #{_forward_core.1} parent=55 // pred_check_branch
        %1327 = sbr.rel (%p1325) target = $region60
      $region59: #{_forward_core.1} parent=55 // pred_region
        %s1328 = smul.u32 16, %s20
      $region60: #{_forward_core.1} parent=55 // pred_fallthru
        _
    $region56: #{_forward_core.1} parent=5 // pred_fallthru
      _
    %p1329 = scmp.le.s32.totalorder 2, %s15
    // Predicated region
    $region61: #{_forward_core.1} parent=5 // pred_check
      %p1330 = pneg %p1329
    $region62: #{_forward_core.1} parent=5 // pred_check_branch
      %1332 = sbr.rel (%p1330) target = $region64
    $region63: #{_forward_core.1} parent=5 // pred_region
      %s1333 = ssub.s32 %s15, 2
      // Predicated region
      $region65: #{_forward_core.1} parent=63 // pred_check
        %p1334 = pneg %p238
      $region66: #{_forward_core.1} parent=63 // pred_check_branch
        %1336 = sbr.rel (%p1334) target = $region68
      $region67: #{_forward_core.1} parent=63 // pred_region
        %s1337 = smul.u32 16, %s21
        %p1338 = scmp.lt.s32.totalorder %s1337, 31
        %s1339 = scalar_select %p1338, %s1337, 31
        %s1340 = smul.addr %s1339, 4
        %s1341 = scalar_lea.vmem %s9, %s1340
      $region68: #{_forward_core.1} parent=63 // pred_fallthru
        _
    $region64: #{_forward_core.1} parent=5 // pred_fallthru
      _
  $region6: #{_forward_core.1} parent=0 // loop_footer
    %s19 = sadd.s32 1, %s15
  $region7: #{_forward_core.1} parent=0 // loop_footer_branch
    %14 = sbr.rel target = $region3
  $region8: #{_forward_core.1} parent=0 // loop_exit
    _

// kernel: ne.16
$region0: #{ne.16}
  #allocation2 [shape = 's32[1]{0}', space=sflag, size = 0x4, scoped, tag = 'scoped memory for ne.16']
  %s0 = inlined_call_operand.<no memory space> [shape: s32[], index: 0, kind: input, shape index: {}]
  %s1 = inlined_call_operand.hbm [shape: s32[4096], index: 1, kind: output, shape index: {}]
  %v2 = vstv %s0
  $region1: #{ne.16} parent=0
    #allocation0 [shape = 'u8[16384]{0}', space=vmem, size = 0x4000, scoped, tag = 'operand span for operand 1']
    #allocation1 [shape = 's32[1]{0}', space=sflag, size = 0x4, scoped, tag = 'scoped memory for ne.16']
    %3 = vsyncpa [#allocation1], 0
    %4 = vst [vmem:[#allocation0] sm:$0xff] %v2
    %s5 = scalar_lea.vmem [#allocation0], 8
    %6 = vst [vmem:[%s5] sm:$0xff] %v2
    %s7 = scalar_lea.vmem [#allocation0], 16
    %8 = vst [vmem:[%s7] sm:$0xff] %v2
    %s9 = scalar_lea.vmem [#allocation0], 24
    %10 = vst [vmem:[%s9] sm:$0xff] %v2
    %s12 = ssub.s32 512, 512
    %13 = vsyncadd [#allocation1], %s12
    %s15 = sshll.u32 [#allocation0], 4
    %s16 = int_to_ptr.vmem [resolvable:$true] %s15
    %18 = dma.vmem_to_hbm [thread:$0]  %s16, 512, %s1, [#allocation1]
    %19 = dma.done [#allocation1], 512
    %20 = vsyncpa [#allocation1], 1

</llo_original>
